<compile_context>
chip_gen: v5e
topology: v5e:2x2
jax: 0.10.0
libtpu: 0.0.40
codegen_flags: <defaults>
</compile_context>

<pallas_src>
import functools

import jax
import jax.numpy as jnp
from jax import lax
from jax.experimental import pallas as pl
from jax.experimental.pallas import tpu as pltpu


def _head_kernel(x_ref, gamma_ref, w_ref, bias_ref, o_ref, acc_ref, *, inv_hw, eps):
    h = pl.program_id(1)

    @pl.when(h == 0)
    def _():
        acc_ref[...] = jnp.zeros_like(acc_ref)

    x = x_ref[...].astype(jnp.float32)                 # (TN, THW, C)
    inv_c = 1.0 / x.shape[-1]

    # One sweep over x: both lane-axis (XLU) reductions issued from x directly.
    s1 = jnp.sum(x, axis=-1, keepdims=True)            # (TN, THW, 1)
    s2 = jnp.sum(x * x, axis=-1, keepdims=True)        # (TN, THW, 1)
    mean = s1 * inv_c
    var = s2 * inv_c - mean * mean                     # f32 stats; biased variance
    inv = lax.rsqrt(var + eps)

    # LayerNorm without affine (gamma/beta folded out of the per-element path);
    # accumulate the partial spatial sum of the normalized rows.
    xn = (x - mean) * inv                              # (TN, THW, C)
    acc_ref[...] += jnp.sum(xn, axis=1)                # (TN, C)

    @pl.when(h == pl.num_programs(1) - 1)
    def _():
        # pooled = mean_hw(LN_noaffine(x)) * gamma ; beta is folded into bias_ref.
        pooled = acc_ref[...] * (gamma_ref[...] * inv_hw)           # (TN, C)
        logits = jnp.dot(pooled, w_ref[...],
                         preferred_element_type=jnp.float32) + bias_ref[...]
        o_ref[...] = logits.astype(o_ref.dtype)                     # (TN, K_pad)


def _round_up(v, m):
    return ((v + m - 1) // m) * m


def classification_head(x_nhwc, gamma, beta, w, b, *, tn=8, thw_target=512, eps=1e-5):
    """x_nhwc: [N, H, W, C]; gamma/beta: [C]; w: [C, num_classes]; b: [num_classes]."""
    N, H, Wd, C = x_nhwc.shape
    K = w.shape[1]
    HW = H * Wd

    # ---- batch tile: pad N to a multiple of TN (sublane-dense batch rows) ----
    n_pad = _round_up(max(N, 1), tn)
    # ---- lane-dense output: pad num_classes to a multiple of 128 ----
    k_pad = _round_up(K, 128)
    # ---- spatial tile: THW multiple of 8, block kept around <= ~4 MiB so a
    #      double-buffered x block fits comfortably on all chips (incl. v7x) ----
    hw8 = _round_up(HW, 8)
    itemsize = jnp.dtype(x_nhwc.dtype).itemsize
    max_rows = max(8, (4 * 1024 * 1024) // (tn * C * itemsize))
    thw = min(hw8, thw_target, (max_rows // 8) * 8)
    thw = max(thw, 8)
    hw_pad = _round_up(hw8, thw)

    # Zero-padded rows normalize to exactly zero ((0-0)*rsqrt(eps) == 0), so they
    # contribute nothing to the pooled sum; we divide by the *true* HW below.
    x_flat = x_nhwc.reshape(N, HW, C)
    x_flat = jnp.pad(x_flat, ((0, n_pad - N), (0, hw_pad - HW), (0, 0)))

    gamma2 = gamma.reshape(1, C).astype(jnp.float32)
    # Fold beta into the head bias (beta is constant over HW):
    #   mean_hw(LN(x)) @ W + b == (mean_hw(LN_noaffine(x)) * gamma) @ W + (beta @ W + b)
    bias_fused = (beta.astype(jnp.float32) @ w.astype(jnp.float32)
                  + b.astype(jnp.float32)).reshape(1, K)
    w_p = jnp.pad(w.astype(jnp.float32), ((0, 0), (0, k_pad - K)))
    bias_p = jnp.pad(bias_fused, ((0, 0), (0, k_pad - K)))

    kernel = functools.partial(_head_kernel, inv_hw=1.0 / HW, eps=eps)

    out = pl.pallas_call(
        kernel,
        out_shape=jax.ShapeDtypeStruct((n_pad, k_pad), x_nhwc.dtype),
        grid=(n_pad // tn, hw_pad // thw),
        in_specs=[
            pl.BlockSpec((tn, thw, C), lambda n, h: (n, h, 0)),      # x tile
            pl.BlockSpec((1, C), lambda n, h: (0, 0)),               # gamma (resident)
            pl.BlockSpec((C, k_pad), lambda n, h: (0, 0)),           # head weight (resident)
            pl.BlockSpec((1, k_pad), lambda n, h: (0, 0)),           # fused bias (resident)
        ],
        out_specs=pl.BlockSpec((tn, k_pad), lambda n, h: (n, 0)),
        scratch_shapes=[pltpu.VMEM((tn, C), jnp.float32)],           # pooled-sum accumulator
        compiler_params=pltpu.CompilerParams(
            dimension_semantics=("parallel", "arbitrary"),
            vmem_limit_bytes=48 * 1024 * 1024,
        ),
    )(x_flat, gamma2, w_p, bias_p)

    return out[:N, :K]


def _reference(x_nhwc, gamma, beta, w, b):
    # Pure-JAX reference mirroring the PyTorch forward.
    xf = x_nhwc.astype(jnp.float32)
    mean = jnp.mean(xf, axis=-1, keepdims=True)
    var = jnp.mean((xf - mean) ** 2, axis=-1, keepdims=True)
    normed = (xf - mean) * lax.rsqrt(var + 1e-5) * gamma + beta     # [N,H,W,C]
    pooled = jnp.mean(normed, axis=(1, 2))                          # [N,C]
    return pooled @ w + b                                           # [N,num_classes]


if __name__ == "__main__":
    key = jax.random.PRNGKey(0)
    k_x, k_g, k_b, k_w, k_hb = jax.random.split(key, 5)

    N, H, W, C = 2, 8, 8, 32          # num_features = 32
    num_classes = 8

    x = jax.random.normal(k_x, (N, H, W, C), dtype=jnp.float32)
    gamma = 1.0 + 0.1 * jax.random.normal(k_g, (C,), dtype=jnp.float32)
    beta = 0.1 * jax.random.normal(k_b, (C,), dtype=jnp.float32)
    w = jax.random.normal(k_w, (C, num_classes), dtype=jnp.float32) / jnp.sqrt(C)
    b = 0.01 * jax.random.normal(k_hb, (num_classes,), dtype=jnp.float32)

    out = classification_head(x, gamma, beta, w, b)
    out = jax.block_until_ready(out)

    ref = _reference(x, gamma, beta, w, b)
    assert out.shape == (N, num_classes)
    assert jnp.allclose(out, ref, atol=1e-4, rtol=1e-4), "mismatch vs reference"

    print("KERNEL_OK")
</pallas_src>

<mosaic_0001>
module attributes {stable_mosaic.version = 11 : i64} {
  func.func @_head_kernel(%arg0: i32, %arg1: i32, %arg2: memref<8x64x32xf32, #tpu.memory_space<vmem>>, %arg3: memref<1x32xf32, #tpu.memory_space<vmem>>, %arg4: memref<32x128xf32, #tpu.memory_space<vmem>>, %arg5: memref<1x128xf32, #tpu.memory_space<vmem>>, %arg6: memref<8x128xf32, #tpu.memory_space<vmem>>, %arg7: memref<8x32xf32, #tpu.memory_space<vmem>>) attributes {dimension_semantics = [#tpu.dimension_semantics<parallel>, #tpu.dimension_semantics<arbitrary>], iteration_bounds = array<i64: 1, 1>, scalar_prefetch = 0 : i64, scratch_operands = 1 : i64, tpu.core_type = #tpu.core_type<tc>, window_params = [{transform_indices = @transform_0, window_bounds = array<i64: 8, 64, 32>}, {pipeline_mode = #tpu.pipeline_mode<synchronous>, transform_indices = @transform_1, window_bounds = array<i64: 1, 32>}, {pipeline_mode = #tpu.pipeline_mode<synchronous>, transform_indices = @transform_2, window_bounds = array<i64: 32, 128>}, {pipeline_mode = #tpu.pipeline_mode<synchronous>, transform_indices = @transform_3, window_bounds = array<i64: 1, 128>}, {transform_indices = @transform_4, window_bounds = array<i64: 8, 128>}]} {
    %c0_i32 = arith.constant 0 : i32
    %0 = arith.cmpi eq, %arg1, %c0_i32 : i32
    %1 = arith.extui %0 : i1 to i32
    %c0_i32_0 = arith.constant 0 : i32
    %2 = arith.cmpi ne, %1, %c0_i32_0 : i32
    scf.if %2 {
      %cst_14 = arith.constant 0.000000e+00 : f32
      %29 = vector.broadcast %cst_14 : f32 to vector<8x32xf32>
      %c0_15 = arith.constant 0 : index
      %c0_16 = arith.constant 0 : index
      %30 = vector.load %arg7[%c0_15, %c0_16] : memref<8x32xf32, #tpu.memory_space<vmem>>, vector<8x32xf32>
      tpu.vector_store %arg7[%c0_15, %c0_16], %29 {strides = array<i32>} : memref<8x32xf32, #tpu.memory_space<vmem>>, vector<8x32xf32>,
    } else {
    }
    %c0 = arith.constant 0 : index
    %c0_1 = arith.constant 0 : index
    %c0_2 = arith.constant 0 : index
    %3 = vector.load %arg2[%c0, %c0_1, %c0_2] : memref<8x64x32xf32, #tpu.memory_space<vmem>>, vector<8x64x32xf32>
    %cst = arith.constant dense<0.000000e+00> : vector<8x64xf32>
    %4 = vector.multi_reduction <add>, %3, %cst [2] : vector<8x64x32xf32> to vector<8x64xf32>
    %5 = vector.shape_cast %4 : vector<8x64xf32> to vector<8x64x1xf32>
    %6 = arith.mulf %3, %3 : vector<8x64x32xf32>
    %cst_3 = arith.constant dense<0.000000e+00> : vector<8x64xf32>
    %7 = vector.multi_reduction <add>, %6, %cst_3 [2] : vector<8x64x32xf32> to vector<8x64xf32>
    %8 = vector.shape_cast %7 : vector<8x64xf32> to vector<8x64x1xf32>
    %cst_4 = arith.constant 3.125000e-02 : f32
    %9 = vector.broadcast %cst_4 : f32 to vector<8x64x1xf32>
    %10 = arith.mulf %5, %9 : vector<8x64x1xf32>
    %cst_5 = arith.constant 3.125000e-02 : f32
    %11 = vector.broadcast %cst_5 : f32 to vector<8x64x1xf32>
    %12 = arith.mulf %8, %11 : vector<8x64x1xf32>
    %13 = arith.mulf %10, %10 : vector<8x64x1xf32>
    %14 = arith.subf %12, %13 : vector<8x64x1xf32>
    %cst_6 = arith.constant 9.99999974E-6 : f32
    %15 = vector.broadcast %cst_6 : f32 to vector<8x64x1xf32>
    %16 = arith.addf %14, %15 : vector<8x64x1xf32>
    %17 = math.rsqrt %16 : vector<8x64x1xf32>
    %18 = vector.broadcast %10 : vector<8x64x1xf32> to vector<8x64x32xf32>
    %19 = arith.subf %3, %18 : vector<8x64x32xf32>
    %20 = vector.broadcast %17 : vector<8x64x1xf32> to vector<8x64x32xf32>
    %21 = arith.mulf %19, %20 : vector<8x64x32xf32>
    %c0_7 = arith.constant 0 : index
    %c0_8 = arith.constant 0 : index
    %22 = vector.load %arg7[%c0_7, %c0_8] : memref<8x32xf32, #tpu.memory_space<vmem>>, vector<8x32xf32>
    %cst_9 = arith.constant dense<0.000000e+00> : vector<8x32xf32>
    %23 = vector.multi_reduction <add>, %21, %cst_9 [1] : vector<8x64x32xf32> to vector<8x32xf32>
    %24 = arith.addf %22, %23 : vector<8x32xf32>
    %c0_10 = arith.constant 0 : index
    %c0_11 = arith.constant 0 : index
    %25 = vector.load %arg7[%c0_10, %c0_11] : memref<8x32xf32, #tpu.memory_space<vmem>>, vector<8x32xf32>
    tpu.vector_store %arg7[%c0_10, %c0_11], %24 {strides = array<i32>} : memref<8x32xf32, #tpu.memory_space<vmem>>, vector<8x32xf32>,
    %c0_i32_12 = arith.constant 0 : i32
    %26 = arith.cmpi eq, %arg1, %c0_i32_12 : i32
    %27 = arith.extui %26 : i1 to i32
    %c0_i32_13 = arith.constant 0 : i32
    %28 = arith.cmpi ne, %27, %c0_i32_13 : i32
    scf.if %28 {
      %c0_14 = arith.constant 0 : index
      %c0_15 = arith.constant 0 : index
      %29 = vector.load %arg7[%c0_14, %c0_15] : memref<8x32xf32, #tpu.memory_space<vmem>>, vector<8x32xf32>
      %c0_16 = arith.constant 0 : index
      %c0_17 = arith.constant 0 : index
      %30 = vector.load %arg3[%c0_16, %c0_17] : memref<1x32xf32, #tpu.memory_space<vmem>>, vector<1x32xf32>
      %cst_18 = arith.constant 1.562500e-02 : f32
      %31 = vector.broadcast %cst_18 : f32 to vector<1x32xf32>
      %32 = arith.mulf %30, %31 : vector<1x32xf32>
      %33 = vector.broadcast %32 : vector<1x32xf32> to vector<8x32xf32>
      %34 = arith.mulf %29, %33 : vector<8x32xf32>
      %c0_19 = arith.constant 0 : index
      %c0_20 = arith.constant 0 : index
      %35 = vector.load %arg4[%c0_19, %c0_20] : memref<32x128xf32, #tpu.memory_space<vmem>>, vector<32x128xf32>
      %cst_21 = arith.constant dense<0.000000e+00> : vector<8x128xf32>
      %36 = tpu.matmul %34, %35, %cst_21 {dimension_numbers = #tpu.dot_dimension_numbers<[1], [0], [0], [1], [0, 0, 1, 1], [], []>} : vector<8x32xf32>, vector<32x128xf32>, vector<8x128xf32> -> vector<8x128xf32>
      %c0_22 = arith.constant 0 : index
      %c0_23 = arith.constant 0 : index
      %37 = vector.load %arg5[%c0_22, %c0_23] : memref<1x128xf32, #tpu.memory_space<vmem>>, vector<1x128xf32>
      %38 = vector.broadcast %37 : vector<1x128xf32> to vector<8x128xf32>
      %39 = arith.addf %36, %38 : vector<8x128xf32>
      %c0_24 = arith.constant 0 : index
      %c0_25 = arith.constant 0 : index
      %40 = vector.load %arg6[%c0_24, %c0_25] : memref<8x128xf32, #tpu.memory_space<vmem>>, vector<8x128xf32>
      tpu.vector_store %arg6[%c0_24, %c0_25], %39 {strides = array<i32>} : memref<8x128xf32, #tpu.memory_space<vmem>>, vector<8x128xf32>,
    } else {
    }
    return
  }
  func.func @transform_0(%arg0: i32, %arg1: i32) -> (i32, i32, i32) {
    %c0_i32 = arith.constant 0 : i32
    %c0_i32_0 = arith.constant 0 : i32
    return %arg0, %arg1, %c0_i32 : i32, i32, i32
  }
  func.func @transform_1(%arg0: i32, %arg1: i32) -> (i32, i32) {
    %c0_i32 = arith.constant 0 : i32
    %c0_i32_0 = arith.constant 0 : i32
    %c0_i32_1 = arith.constant 0 : i32
    return %c0_i32, %c0_i32_0 : i32, i32
  }
  func.func @transform_2(%arg0: i32, %arg1: i32) -> (i32, i32) {
    %c0_i32 = arith.constant 0 : i32
    %c0_i32_0 = arith.constant 0 : i32
    %c0_i32_1 = arith.constant 0 : i32
    return %c0_i32, %c0_i32_0 : i32, i32
  }
  func.func @transform_3(%arg0: i32, %arg1: i32) -> (i32, i32) {
    %c0_i32 = arith.constant 0 : i32
    %c0_i32_0 = arith.constant 0 : i32
    %c0_i32_1 = arith.constant 0 : i32
    return %c0_i32, %c0_i32_0 : i32, i32
  }
  func.func @transform_4(%arg0: i32, %arg1: i32) -> (i32, i32) {
    %c0_i32 = arith.constant 0 : i32
    %c0_i32_0 = arith.constant 0 : i32
    return %arg0, %c0_i32 : i32, i32
  }
}

</mosaic_0001>

<llo_original>
// kernel: tpu_custom_call.1
$region0: #{tpu_custom_call.1}
  #allocation0 [shape = 'u32[]', space=smem, size = 0x4, offset = 0x4, fixed_abs, tag = 'smem constant byte address 0x4 - core index']
  #allocation1 [shape = 'u32[72,128]{1,0:T(1,128)}', space=vmem, size = 0x9000, scoped, tag = 'internal scratch']
  #allocation2 [shape = 'f32[8,32]{1,0:T(8,128)}', space=vmem, size = 0x1000, scoped, tag = 'scratch operand']
  %s0 = inlined_call_operand.vmem [shape: f32[8,64,32], index: 0, kind: input, shape index: {}]
  %s1 = inlined_call_operand.vmem [shape: f32[1,32], index: 1, kind: input, shape index: {}]
  %s2 = inlined_call_operand.vmem [shape: f32[32,128], index: 2, kind: input, shape index: {}]
  %s3 = inlined_call_operand.vmem [shape: f32[1,128], index: 3, kind: input, shape index: {}]
  %s4 = inlined_call_operand.hbm [shape: f32[8,128], index: 4, kind: output, shape index: {}]
  %s5 = sld [smem:[#allocation0]]
  $region34: #{tpu_custom_call.1} parent=0
    _
  %s7 = ssub.s32 1, %s5
  %s8 = scalar_select 0, %s7, %s5
  $region1: #{tpu_custom_call.1} parent=0
    #allocation3 [shape = 'u8[4096]{0}', space=vmem, size = 0x1000, scoped, tag = 'output window, operand 0, single buffered']
    #allocation4 [shape = 's32[1]{0}', space=sflag, size = 0x4, scoped, tag = 'scoped memory for tpu_custom_call.1']
    %9 = vsyncpa [#allocation4], 0
    // Predicated region
    $region2: #{tpu_custom_call.1} parent=1 // pred_check
      _
    $region3: #{tpu_custom_call.1} parent=1 // pred_check_branch
      %11 = sbr.rel (0) target = $region5
    $region4: #{tpu_custom_call.1} parent=1 // pred_region
      _
    $region5: #{tpu_custom_call.1} parent=1 // pred_fallthru
      _
    // Predicated region
    $region6: #{tpu_custom_call.1} parent=1 // pred_check
      _
    $region7: #{tpu_custom_call.1} parent=1 // pred_check_branch
      %13 = sbr.rel (0) target = $region9
    $region8: #{tpu_custom_call.1} parent=1 // pred_region
      _
    $region9: #{tpu_custom_call.1} parent=1 // pred_fallthru
      _
    // Predicated region
    $region10: #{tpu_custom_call.1} parent=1 // pred_check
      _
    $region11: #{tpu_custom_call.1} parent=1 // pred_check_branch
      %15 = sbr.rel (0) target = $region13
    $region12: #{tpu_custom_call.1} parent=1 // pred_region
      _
    $region13: #{tpu_custom_call.1} parent=1 // pred_fallthru
      _
    // Predicated region
    $region14: #{tpu_custom_call.1} parent=1 // pred_check
      _
    $region15: #{tpu_custom_call.1} parent=1 // pred_check_branch
      %17 = sbr.rel (0) target = $region17
    $region16: #{tpu_custom_call.1} parent=1 // pred_region
      _
    $region17: #{tpu_custom_call.1} parent=1 // pred_fallthru
      _
    %p18 = scmp.eq.s32.totalorder 0, 0
    // Predicated region
    $region18: #{tpu_custom_call.1} parent=1 // pred_check
      %p19 = pneg %p18
    $region19: #{tpu_custom_call.1} parent=1 // pred_check_branch
      %21 = sbr.rel (%p19) target = $region21
    $region20: #{tpu_custom_call.1} parent=1 // pred_region
      %vm22 = vcmask 261120
      %23 = vst.msk [vmem:[#allocation2] sm:$0xff] %vm22, 0.0
    $region21: #{tpu_custom_call.1} parent=1 // pred_fallthru
      _
    %v24 = vld [vmem:[%s0] sm:$0xff]
    %v25 = vld [vmem:[%s0 + $0x8] sm:$0xff]
    %v26 = vld [vmem:[%s0 + $0x10] sm:$0xff]
    %v27 = vld [vmem:[%s0 + $0x18] sm:$0xff]
    %v28 = vld [vmem:[%s0 + $0x20] sm:$0xff]
    %v29 = vld [vmem:[%s0 + $0x28] sm:$0xff]
    %v30 = vld [vmem:[%s0 + $0x30] sm:$0xff]
    %v31 = vld [vmem:[%s0 + $0x38] sm:$0xff]
    %v32 = vld [vmem:[%s0 + $0x40] sm:$0xff]
    %v33 = vld [vmem:[%s0 + $0x48] sm:$0xff]
    %v34 = vld [vmem:[%s0 + $0x50] sm:$0xff]
    %v35 = vld [vmem:[%s0 + $0x58] sm:$0xff]
    %v36 = vld [vmem:[%s0 + $0x60] sm:$0xff]
    %v37 = vld [vmem:[%s0 + $0x68] sm:$0xff]
    %v38 = vld [vmem:[%s0 + $0x70] sm:$0xff]
    %v39 = vld [vmem:[%s0 + $0x78] sm:$0xff]
    %v40 = vld [vmem:[%s0 + $0x80] sm:$0xff]
    %v41 = vld [vmem:[%s0 + $0x88] sm:$0xff]
    %v42 = vld [vmem:[%s0 + $0x90] sm:$0xff]
    %v43 = vld [vmem:[%s0 + $0x98] sm:$0xff]
    %v44 = vld [vmem:[%s0 + $0xa0] sm:$0xff]
    %v45 = vld [vmem:[%s0 + $0xa8] sm:$0xff]
    %v46 = vld [vmem:[%s0 + $0xb0] sm:$0xff]
    %v47 = vld [vmem:[%s0 + $0xb8] sm:$0xff]
    %v48 = vld [vmem:[%s0 + $0xc0] sm:$0xff]
    %v49 = vld [vmem:[%s0 + $0xc8] sm:$0xff]
    %v50 = vld [vmem:[%s0 + $0xd0] sm:$0xff]
    %v51 = vld [vmem:[%s0 + $0xd8] sm:$0xff]
    %v52 = vld [vmem:[%s0 + $0xe0] sm:$0xff]
    %v53 = vld [vmem:[%s0 + $0xe8] sm:$0xff]
    %v54 = vld [vmem:[%s0 + $0xf0] sm:$0xff]
    %v55 = vld [vmem:[%s0 + $0xf8] sm:$0xff]
    %v56 = vld [vmem:[%s0 + $0x100] sm:$0xff]
    %v57 = vld [vmem:[%s0 + $0x108] sm:$0xff]
    %v58 = vld [vmem:[%s0 + $0x110] sm:$0xff]
    %v59 = vld [vmem:[%s0 + $0x118] sm:$0xff]
    %v60 = vld [vmem:[%s0 + $0x120] sm:$0xff]
    %v61 = vld [vmem:[%s0 + $0x128] sm:$0xff]
    %v62 = vld [vmem:[%s0 + $0x130] sm:$0xff]
    %v63 = vld [vmem:[%s0 + $0x138] sm:$0xff]
    %v64 = vld [vmem:[%s0 + $0x140] sm:$0xff]
    %v65 = vld [vmem:[%s0 + $0x148] sm:$0xff]
    %v66 = vld [vmem:[%s0 + $0x150] sm:$0xff]
    %v67 = vld [vmem:[%s0 + $0x158] sm:$0xff]
    %v68 = vld [vmem:[%s0 + $0x160] sm:$0xff]
    %v69 = vld [vmem:[%s0 + $0x168] sm:$0xff]
    %v70 = vld [vmem:[%s0 + $0x170] sm:$0xff]
    %v71 = vld [vmem:[%s0 + $0x178] sm:$0xff]
    %v72 = vld [vmem:[%s0 + $0x180] sm:$0xff]
    %v73 = vld [vmem:[%s0 + $0x188] sm:$0xff]
    %v74 = vld [vmem:[%s0 + $0x190] sm:$0xff]
    %v75 = vld [vmem:[%s0 + $0x198] sm:$0xff]
    %v76 = vld [vmem:[%s0 + $0x1a0] sm:$0xff]
    %v77 = vld [vmem:[%s0 + $0x1a8] sm:$0xff]
    %v78 = vld [vmem:[%s0 + $0x1b0] sm:$0xff]
    %v79 = vld [vmem:[%s0 + $0x1b8] sm:$0xff]
    %v80 = vld [vmem:[%s0 + $0x1c0] sm:$0xff]
    %v81 = vld [vmem:[%s0 + $0x1c8] sm:$0xff]
    %v82 = vld [vmem:[%s0 + $0x1d0] sm:$0xff]
    %v83 = vld [vmem:[%s0 + $0x1d8] sm:$0xff]
    %v84 = vld [vmem:[%s0 + $0x1e0] sm:$0xff]
    %v85 = vld [vmem:[%s0 + $0x1e8] sm:$0xff]
    %v86 = vld [vmem:[%s0 + $0x1f0] sm:$0xff]
    %v87 = vld [vmem:[%s0 + $0x1f8] sm:$0xff]
    %vm88 = vcmask 261120
    %v89 = vsel %vm88, %v24, 0.0
    %90 = vadd.xlane.f32.xlu0 %v89
    %v91 = vpop.xlane.xlu0 %90
    %v92 = vsel %vm88, %v25, 0.0
    %93 = vadd.xlane.f32.xlu0 %v92
    %v94 = vpop.xlane.xlu0 %93
    %v95 = vsel %vm88, %v26, 0.0
    %96 = vadd.xlane.f32.xlu0 %v95
    %v97 = vpop.xlane.xlu0 %96
    %v98 = vsel %vm88, %v27, 0.0
    %99 = vadd.xlane.f32.xlu0 %v98
    %v100 = vpop.xlane.xlu0 %99
    %v101 = vsel %vm88, %v28, 0.0
    %102 = vadd.xlane.f32.xlu0 %v101
    %v103 = vpop.xlane.xlu0 %102
    %v104 = vsel %vm88, %v29, 0.0
    %105 = vadd.xlane.f32.xlu0 %v104
    %v106 = vpop.xlane.xlu0 %105
    %v107 = vsel %vm88, %v30, 0.0
    %108 = vadd.xlane.f32.xlu0 %v107
    %v109 = vpop.xlane.xlu0 %108
    %v110 = vsel %vm88, %v31, 0.0
    %111 = vadd.xlane.f32.xlu0 %v110
    %v112 = vpop.xlane.xlu0 %111
    %v113 = vsel %vm88, %v32, 0.0
    %114 = vadd.xlane.f32.xlu0 %v113
    %v115 = vpop.xlane.xlu0 %114
    %v116 = vsel %vm88, %v33, 0.0
    %117 = vadd.xlane.f32.xlu0 %v116
    %v118 = vpop.xlane.xlu0 %117
    %v119 = vsel %vm88, %v34, 0.0
    %120 = vadd.xlane.f32.xlu0 %v119
    %v121 = vpop.xlane.xlu0 %120
    %v122 = vsel %vm88, %v35, 0.0
    %123 = vadd.xlane.f32.xlu0 %v122
    %v124 = vpop.xlane.xlu0 %123
    %v125 = vsel %vm88, %v36, 0.0
    %126 = vadd.xlane.f32.xlu0 %v125
    %v127 = vpop.xlane.xlu0 %126
    %v128 = vsel %vm88, %v37, 0.0
    %129 = vadd.xlane.f32.xlu0 %v128
    %v130 = vpop.xlane.xlu0 %129
    %v131 = vsel %vm88, %v38, 0.0
    %132 = vadd.xlane.f32.xlu0 %v131
    %v133 = vpop.xlane.xlu0 %132
    %v134 = vsel %vm88, %v39, 0.0
    %135 = vadd.xlane.f32.xlu0 %v134
    %v136 = vpop.xlane.xlu0 %135
    %v137 = vsel %vm88, %v40, 0.0
    %138 = vadd.xlane.f32.xlu0 %v137
    %v139 = vpop.xlane.xlu0 %138
    %v140 = vsel %vm88, %v41, 0.0
    %141 = vadd.xlane.f32.xlu0 %v140
    %v142 = vpop.xlane.xlu0 %141
    %v143 = vsel %vm88, %v42, 0.0
    %144 = vadd.xlane.f32.xlu0 %v143
    %v145 = vpop.xlane.xlu0 %144
    %v146 = vsel %vm88, %v43, 0.0
    %147 = vadd.xlane.f32.xlu0 %v146
    %v148 = vpop.xlane.xlu0 %147
    %v149 = vsel %vm88, %v44, 0.0
    %150 = vadd.xlane.f32.xlu0 %v149
    %v151 = vpop.xlane.xlu0 %150
    %v152 = vsel %vm88, %v45, 0.0
    %153 = vadd.xlane.f32.xlu0 %v152
    %v154 = vpop.xlane.xlu0 %153
    %v155 = vsel %vm88, %v46, 0.0
    %156 = vadd.xlane.f32.xlu0 %v155
    %v157 = vpop.xlane.xlu0 %156
    %v158 = vsel %vm88, %v47, 0.0
    %159 = vadd.xlane.f32.xlu0 %v158
    %v160 = vpop.xlane.xlu0 %159
    %v161 = vsel %vm88, %v48, 0.0
    %162 = vadd.xlane.f32.xlu0 %v161
    %v163 = vpop.xlane.xlu0 %162
    %v164 = vsel %vm88, %v49, 0.0
    %165 = vadd.xlane.f32.xlu0 %v164
    %v166 = vpop.xlane.xlu0 %165
    %v167 = vsel %vm88, %v50, 0.0
    %168 = vadd.xlane.f32.xlu0 %v167
    %v169 = vpop.xlane.xlu0 %168
    %v170 = vsel %vm88, %v51, 0.0
    %171 = vadd.xlane.f32.xlu0 %v170
    %v172 = vpop.xlane.xlu0 %171
    %v173 = vsel %vm88, %v52, 0.0
    %174 = vadd.xlane.f32.xlu0 %v173
    %v175 = vpop.xlane.xlu0 %174
    %v176 = vsel %vm88, %v53, 0.0
    %177 = vadd.xlane.f32.xlu0 %v176
    %v178 = vpop.xlane.xlu0 %177
    %v179 = vsel %vm88, %v54, 0.0
    %180 = vadd.xlane.f32.xlu0 %v179
    %v181 = vpop.xlane.xlu0 %180
    %v182 = vsel %vm88, %v55, 0.0
    %183 = vadd.xlane.f32.xlu0 %v182
    %v184 = vpop.xlane.xlu0 %183
    %v185 = vsel %vm88, %v56, 0.0
    %186 = vadd.xlane.f32.xlu0 %v185
    %v187 = vpop.xlane.xlu0 %186
    %v188 = vsel %vm88, %v57, 0.0
    %189 = vadd.xlane.f32.xlu0 %v188
    %v190 = vpop.xlane.xlu0 %189
    %v191 = vsel %vm88, %v58, 0.0
    %192 = vadd.xlane.f32.xlu0 %v191
    %v193 = vpop.xlane.xlu0 %192
    %v194 = vsel %vm88, %v59, 0.0
    %195 = vadd.xlane.f32.xlu0 %v194
    %v196 = vpop.xlane.xlu0 %195
    %v197 = vsel %vm88, %v60, 0.0
    %198 = vadd.xlane.f32.xlu0 %v197
    %v199 = vpop.xlane.xlu0 %198
    %v200 = vsel %vm88, %v61, 0.0
    %201 = vadd.xlane.f32.xlu0 %v200
    %v202 = vpop.xlane.xlu0 %201
    %v203 = vsel %vm88, %v62, 0.0
    %204 = vadd.xlane.f32.xlu0 %v203
    %v205 = vpop.xlane.xlu0 %204
    %v206 = vsel %vm88, %v63, 0.0
    %207 = vadd.xlane.f32.xlu0 %v206
    %v208 = vpop.xlane.xlu0 %207
    %v209 = vsel %vm88, %v64, 0.0
    %210 = vadd.xlane.f32.xlu0 %v209
    %v211 = vpop.xlane.xlu0 %210
    %v212 = vsel %vm88, %v65, 0.0
    %213 = vadd.xlane.f32.xlu0 %v212
    %v214 = vpop.xlane.xlu0 %213
    %v215 = vsel %vm88, %v66, 0.0
    %216 = vadd.xlane.f32.xlu0 %v215
    %v217 = vpop.xlane.xlu0 %216
    %v218 = vsel %vm88, %v67, 0.0
    %219 = vadd.xlane.f32.xlu0 %v218
    %v220 = vpop.xlane.xlu0 %219
    %v221 = vsel %vm88, %v68, 0.0
    %222 = vadd.xlane.f32.xlu0 %v221
    %v223 = vpop.xlane.xlu0 %222
    %v224 = vsel %vm88, %v69, 0.0
    %225 = vadd.xlane.f32.xlu0 %v224
    %v226 = vpop.xlane.xlu0 %225
    %v227 = vsel %vm88, %v70, 0.0
    %228 = vadd.xlane.f32.xlu0 %v227
    %v229 = vpop.xlane.xlu0 %228
    %v230 = vsel %vm88, %v71, 0.0
    %231 = vadd.xlane.f32.xlu0 %v230
    %v232 = vpop.xlane.xlu0 %231
    %v233 = vsel %vm88, %v72, 0.0
    %234 = vadd.xlane.f32.xlu0 %v233
    %v235 = vpop.xlane.xlu0 %234
    %v236 = vsel %vm88, %v73, 0.0
    %237 = vadd.xlane.f32.xlu0 %v236
    %v238 = vpop.xlane.xlu0 %237
    %v239 = vsel %vm88, %v74, 0.0
    %240 = vadd.xlane.f32.xlu0 %v239
    %v241 = vpop.xlane.xlu0 %240
    %v242 = vsel %vm88, %v75, 0.0
    %243 = vadd.xlane.f32.xlu0 %v242
    %v244 = vpop.xlane.xlu0 %243
    %v245 = vsel %vm88, %v76, 0.0
    %246 = vadd.xlane.f32.xlu0 %v245
    %v247 = vpop.xlane.xlu0 %246
    %v248 = vsel %vm88, %v77, 0.0
    %249 = vadd.xlane.f32.xlu0 %v248
    %v250 = vpop.xlane.xlu0 %249
    %v251 = vsel %vm88, %v78, 0.0
    %252 = vadd.xlane.f32.xlu0 %v251
    %v253 = vpop.xlane.xlu0 %252
    %v254 = vsel %vm88, %v79, 0.0
    %255 = vadd.xlane.f32.xlu0 %v254
    %v256 = vpop.xlane.xlu0 %255
    %v257 = vsel %vm88, %v80, 0.0
    %258 = vadd.xlane.f32.xlu0 %v257
    %v259 = vpop.xlane.xlu0 %258
    %v260 = vsel %vm88, %v81, 0.0
    %261 = vadd.xlane.f32.xlu0 %v260
    %v262 = vpop.xlane.xlu0 %261
    %v263 = vsel %vm88, %v82, 0.0
    %264 = vadd.xlane.f32.xlu0 %v263
    %v265 = vpop.xlane.xlu0 %264
    %v266 = vsel %vm88, %v83, 0.0
    %267 = vadd.xlane.f32.xlu0 %v266
    %v268 = vpop.xlane.xlu0 %267
    %v269 = vsel %vm88, %v84, 0.0
    %270 = vadd.xlane.f32.xlu0 %v269
    %v271 = vpop.xlane.xlu0 %270
    %v272 = vsel %vm88, %v85, 0.0
    %273 = vadd.xlane.f32.xlu0 %v272
    %v274 = vpop.xlane.xlu0 %273
    %v275 = vsel %vm88, %v86, 0.0
    %276 = vadd.xlane.f32.xlu0 %v275
    %v277 = vpop.xlane.xlu0 %276
    %v278 = vsel %vm88, %v87, 0.0
    %279 = vadd.xlane.f32.xlu0 %v278
    %v280 = vpop.xlane.xlu0 %279
    %v281 = vmul.f32 %v24, %v24
    %v282 = vmul.f32 %v25, %v25
    %v283 = vmul.f32 %v26, %v26
    %v284 = vmul.f32 %v27, %v27
    %v285 = vmul.f32 %v28, %v28
    %v286 = vmul.f32 %v29, %v29
    %v287 = vmul.f32 %v30, %v30
    %v288 = vmul.f32 %v31, %v31
    %v289 = vmul.f32 %v32, %v32
    %v290 = vmul.f32 %v33, %v33
    %v291 = vmul.f32 %v34, %v34
    %v292 = vmul.f32 %v35, %v35
    %v293 = vmul.f32 %v36, %v36
    %v294 = vmul.f32 %v37, %v37
    %v295 = vmul.f32 %v38, %v38
    %v296 = vmul.f32 %v39, %v39
    %v297 = vmul.f32 %v40, %v40
    %v298 = vmul.f32 %v41, %v41
    %v299 = vmul.f32 %v42, %v42
    %v300 = vmul.f32 %v43, %v43
    %v301 = vmul.f32 %v44, %v44
    %v302 = vmul.f32 %v45, %v45
    %v303 = vmul.f32 %v46, %v46
    %v304 = vmul.f32 %v47, %v47
    %v305 = vmul.f32 %v48, %v48
    %v306 = vmul.f32 %v49, %v49
    %v307 = vmul.f32 %v50, %v50
    %v308 = vmul.f32 %v51, %v51
    %v309 = vmul.f32 %v52, %v52
    %v310 = vmul.f32 %v53, %v53
    %v311 = vmul.f32 %v54, %v54
    %v312 = vmul.f32 %v55, %v55
    %v313 = vmul.f32 %v56, %v56
    %v314 = vmul.f32 %v57, %v57
    %v315 = vmul.f32 %v58, %v58
    %v316 = vmul.f32 %v59, %v59
    %v317 = vmul.f32 %v60, %v60
    %v318 = vmul.f32 %v61, %v61
    %v319 = vmul.f32 %v62, %v62
    %v320 = vmul.f32 %v63, %v63
    %v321 = vmul.f32 %v64, %v64
    %v322 = vmul.f32 %v65, %v65
    %v323 = vmul.f32 %v66, %v66
    %v324 = vmul.f32 %v67, %v67
    %v325 = vmul.f32 %v68, %v68
    %v326 = vmul.f32 %v69, %v69
    %v327 = vmul.f32 %v70, %v70
    %v328 = vmul.f32 %v71, %v71
    %v329 = vmul.f32 %v72, %v72
    %v330 = vmul.f32 %v73, %v73
    %v331 = vmul.f32 %v74, %v74
    %v332 = vmul.f32 %v75, %v75
    %v333 = vmul.f32 %v76, %v76
    %v334 = vmul.f32 %v77, %v77
    %v335 = vmul.f32 %v78, %v78
    %v336 = vmul.f32 %v79, %v79
    %v337 = vmul.f32 %v80, %v80
    %v338 = vmul.f32 %v81, %v81
    %v339 = vmul.f32 %v82, %v82
    %v340 = vmul.f32 %v83, %v83
    %v341 = vmul.f32 %v84, %v84
    %v342 = vmul.f32 %v85, %v85
    %v343 = vmul.f32 %v86, %v86
    %v344 = vmul.f32 %v87, %v87
    %v345 = vsel %vm88, %v281, 0.0
    %346 = vadd.xlane.f32.xlu0 %v345
    %v347 = vpop.xlane.xlu0 %346
    %v348 = vsel %vm88, %v282, 0.0
    %349 = vadd.xlane.f32.xlu0 %v348
    %v350 = vpop.xlane.xlu0 %349
    %v351 = vsel %vm88, %v283, 0.0
    %352 = vadd.xlane.f32.xlu0 %v351
    %v353 = vpop.xlane.xlu0 %352
    %v354 = vsel %vm88, %v284, 0.0
    %355 = vadd.xlane.f32.xlu0 %v354
    %v356 = vpop.xlane.xlu0 %355
    %v357 = vsel %vm88, %v285, 0.0
    %358 = vadd.xlane.f32.xlu0 %v357
    %v359 = vpop.xlane.xlu0 %358
    %v360 = vsel %vm88, %v286, 0.0
    %361 = vadd.xlane.f32.xlu0 %v360
    %v362 = vpop.xlane.xlu0 %361
    %v363 = vsel %vm88, %v287, 0.0
    %364 = vadd.xlane.f32.xlu0 %v363
    %v365 = vpop.xlane.xlu0 %364
    %v366 = vsel %vm88, %v288, 0.0
    %367 = vadd.xlane.f32.xlu0 %v366
    %v368 = vpop.xlane.xlu0 %367
    %v369 = vsel %vm88, %v289, 0.0
    %370 = vadd.xlane.f32.xlu0 %v369
    %v371 = vpop.xlane.xlu0 %370
    %v372 = vsel %vm88, %v290, 0.0
    %373 = vadd.xlane.f32.xlu0 %v372
    %v374 = vpop.xlane.xlu0 %373
    %v375 = vsel %vm88, %v291, 0.0
    %376 = vadd.xlane.f32.xlu0 %v375
    %v377 = vpop.xlane.xlu0 %376
    %v378 = vsel %vm88, %v292, 0.0
    %379 = vadd.xlane.f32.xlu0 %v378
    %v380 = vpop.xlane.xlu0 %379
    %v381 = vsel %vm88, %v293, 0.0
    %382 = vadd.xlane.f32.xlu0 %v381
    %v383 = vpop.xlane.xlu0 %382
    %v384 = vsel %vm88, %v294, 0.0
    %385 = vadd.xlane.f32.xlu0 %v384
    %v386 = vpop.xlane.xlu0 %385
    %v387 = vsel %vm88, %v295, 0.0
    %388 = vadd.xlane.f32.xlu0 %v387
    %v389 = vpop.xlane.xlu0 %388
    %v390 = vsel %vm88, %v296, 0.0
    %391 = vadd.xlane.f32.xlu0 %v390
    %v392 = vpop.xlane.xlu0 %391
    %v393 = vsel %vm88, %v297, 0.0
    %394 = vadd.xlane.f32.xlu0 %v393
    %v395 = vpop.xlane.xlu0 %394
    %v396 = vsel %vm88, %v298, 0.0
    %397 = vadd.xlane.f32.xlu0 %v396
    %v398 = vpop.xlane.xlu0 %397
    %v399 = vsel %vm88, %v299, 0.0
    %400 = vadd.xlane.f32.xlu0 %v399
    %v401 = vpop.xlane.xlu0 %400
    %v402 = vsel %vm88, %v300, 0.0
    %403 = vadd.xlane.f32.xlu0 %v402
    %v404 = vpop.xlane.xlu0 %403
    %v405 = vsel %vm88, %v301, 0.0
    %406 = vadd.xlane.f32.xlu0 %v405
    %v407 = vpop.xlane.xlu0 %406
    %v408 = vsel %vm88, %v302, 0.0
    %409 = vadd.xlane.f32.xlu0 %v408
    %v410 = vpop.xlane.xlu0 %409
    %v411 = vsel %vm88, %v303, 0.0
    %412 = vadd.xlane.f32.xlu0 %v411
    %v413 = vpop.xlane.xlu0 %412
    %v414 = vsel %vm88, %v304, 0.0
    %415 = vadd.xlane.f32.xlu0 %v414
    %v416 = vpop.xlane.xlu0 %415
    %v417 = vsel %vm88, %v305, 0.0
    %418 = vadd.xlane.f32.xlu0 %v417
    %v419 = vpop.xlane.xlu0 %418
    %v420 = vsel %vm88, %v306, 0.0
    %421 = vadd.xlane.f32.xlu0 %v420
    %v422 = vpop.xlane.xlu0 %421
    %v423 = vsel %vm88, %v307, 0.0
    %424 = vadd.xlane.f32.xlu0 %v423
    %v425 = vpop.xlane.xlu0 %424
    %v426 = vsel %vm88, %v308, 0.0
    %427 = vadd.xlane.f32.xlu0 %v426
    %v428 = vpop.xlane.xlu0 %427
    %v429 = vsel %vm88, %v309, 0.0
    %430 = vadd.xlane.f32.xlu0 %v429
    %v431 = vpop.xlane.xlu0 %430
    %v432 = vsel %vm88, %v310, 0.0
    %433 = vadd.xlane.f32.xlu0 %v432
    %v434 = vpop.xlane.xlu0 %433
    %v435 = vsel %vm88, %v311, 0.0
    %436 = vadd.xlane.f32.xlu0 %v435
    %v437 = vpop.xlane.xlu0 %436
    %v438 = vsel %vm88, %v312, 0.0
    %439 = vadd.xlane.f32.xlu0 %v438
    %v440 = vpop.xlane.xlu0 %439
    %v441 = vsel %vm88, %v313, 0.0
    %442 = vadd.xlane.f32.xlu0 %v441
    %v443 = vpop.xlane.xlu0 %442
    %v444 = vsel %vm88, %v314, 0.0
    %445 = vadd.xlane.f32.xlu0 %v444
    %v446 = vpop.xlane.xlu0 %445
    %v447 = vsel %vm88, %v315, 0.0
    %448 = vadd.xlane.f32.xlu0 %v447
    %v449 = vpop.xlane.xlu0 %448
    %v450 = vsel %vm88, %v316, 0.0
    %451 = vadd.xlane.f32.xlu0 %v450
    %v452 = vpop.xlane.xlu0 %451
    %v453 = vsel %vm88, %v317, 0.0
    %454 = vadd.xlane.f32.xlu0 %v453
    %v455 = vpop.xlane.xlu0 %454
    %v456 = vsel %vm88, %v318, 0.0
    %457 = vadd.xlane.f32.xlu0 %v456
    %v458 = vpop.xlane.xlu0 %457
    %v459 = vsel %vm88, %v319, 0.0
    %460 = vadd.xlane.f32.xlu0 %v459
    %v461 = vpop.xlane.xlu0 %460
    %v462 = vsel %vm88, %v320, 0.0
    %463 = vadd.xlane.f32.xlu0 %v462
    %v464 = vpop.xlane.xlu0 %463
    %v465 = vsel %vm88, %v321, 0.0
    %466 = vadd.xlane.f32.xlu0 %v465
    %v467 = vpop.xlane.xlu0 %466
    %v468 = vsel %vm88, %v322, 0.0
    %469 = vadd.xlane.f32.xlu0 %v468
    %v470 = vpop.xlane.xlu0 %469
    %v471 = vsel %vm88, %v323, 0.0
    %472 = vadd.xlane.f32.xlu0 %v471
    %v473 = vpop.xlane.xlu0 %472
    %v474 = vsel %vm88, %v324, 0.0
    %475 = vadd.xlane.f32.xlu0 %v474
    %v476 = vpop.xlane.xlu0 %475
    %v477 = vsel %vm88, %v325, 0.0
    %478 = vadd.xlane.f32.xlu0 %v477
    %v479 = vpop.xlane.xlu0 %478
    %v480 = vsel %vm88, %v326, 0.0
    %481 = vadd.xlane.f32.xlu0 %v480
    %v482 = vpop.xlane.xlu0 %481
    %v483 = vsel %vm88, %v327, 0.0
    %484 = vadd.xlane.f32.xlu0 %v483
    %v485 = vpop.xlane.xlu0 %484
    %v486 = vsel %vm88, %v328, 0.0
    %487 = vadd.xlane.f32.xlu0 %v486
    %v488 = vpop.xlane.xlu0 %487
    %v489 = vsel %vm88, %v329, 0.0
    %490 = vadd.xlane.f32.xlu0 %v489
    %v491 = vpop.xlane.xlu0 %490
    %v492 = vsel %vm88, %v330, 0.0
    %493 = vadd.xlane.f32.xlu0 %v492
    %v494 = vpop.xlane.xlu0 %493
    %v495 = vsel %vm88, %v331, 0.0
    %496 = vadd.xlane.f32.xlu0 %v495
    %v497 = vpop.xlane.xlu0 %496
    %v498 = vsel %vm88, %v332, 0.0
    %499 = vadd.xlane.f32.xlu0 %v498
    %v500 = vpop.xlane.xlu0 %499
    %v501 = vsel %vm88, %v333, 0.0
    %502 = vadd.xlane.f32.xlu0 %v501
    %v503 = vpop.xlane.xlu0 %502
    %v504 = vsel %vm88, %v334, 0.0
    %505 = vadd.xlane.f32.xlu0 %v504
    %v506 = vpop.xlane.xlu0 %505
    %v507 = vsel %vm88, %v335, 0.0
    %508 = vadd.xlane.f32.xlu0 %v507
    %v509 = vpop.xlane.xlu0 %508
    %v510 = vsel %vm88, %v336, 0.0
    %511 = vadd.xlane.f32.xlu0 %v510
    %v512 = vpop.xlane.xlu0 %511
    %v513 = vsel %vm88, %v337, 0.0
    %514 = vadd.xlane.f32.xlu0 %v513
    %v515 = vpop.xlane.xlu0 %514
    %v516 = vsel %vm88, %v338, 0.0
    %517 = vadd.xlane.f32.xlu0 %v516
    %v518 = vpop.xlane.xlu0 %517
    %v519 = vsel %vm88, %v339, 0.0
    %520 = vadd.xlane.f32.xlu0 %v519
    %v521 = vpop.xlane.xlu0 %520
    %v522 = vsel %vm88, %v340, 0.0
    %523 = vadd.xlane.f32.xlu0 %v522
    %v524 = vpop.xlane.xlu0 %523
    %v525 = vsel %vm88, %v341, 0.0
    %526 = vadd.xlane.f32.xlu0 %v525
    %v527 = vpop.xlane.xlu0 %526
    %v528 = vsel %vm88, %v342, 0.0
    %529 = vadd.xlane.f32.xlu0 %v528
    %v530 = vpop.xlane.xlu0 %529
    %v531 = vsel %vm88, %v343, 0.0
    %532 = vadd.xlane.f32.xlu0 %v531
    %v533 = vpop.xlane.xlu0 %532
    %v534 = vsel %vm88, %v344, 0.0
    %535 = vadd.xlane.f32.xlu0 %v534
    %v536 = vpop.xlane.xlu0 %535
    %v537 = vmul.f32 %v91, 0.03125
    %v538 = vmul.f32 %v94, 0.03125
    %v539 = vmul.f32 %v97, 0.03125
    %v540 = vmul.f32 %v100, 0.03125
    %v541 = vmul.f32 %v103, 0.03125
    %v542 = vmul.f32 %v106, 0.03125
    %v543 = vmul.f32 %v109, 0.03125
    %v544 = vmul.f32 %v112, 0.03125
    %v545 = vmul.f32 %v115, 0.03125
    %v546 = vmul.f32 %v118, 0.03125
    %v547 = vmul.f32 %v121, 0.03125
    %v548 = vmul.f32 %v124, 0.03125
    %v549 = vmul.f32 %v127, 0.03125
    %v550 = vmul.f32 %v130, 0.03125
    %v551 = vmul.f32 %v133, 0.03125
    %v552 = vmul.f32 %v136, 0.03125
    %v553 = vmul.f32 %v139, 0.03125
    %v554 = vmul.f32 %v142, 0.03125
    %v555 = vmul.f32 %v145, 0.03125
    %v556 = vmul.f32 %v148, 0.03125
    %v557 = vmul.f32 %v151, 0.03125
    %v558 = vmul.f32 %v154, 0.03125
    %v559 = vmul.f32 %v157, 0.03125
    %v560 = vmul.f32 %v160, 0.03125
    %v561 = vmul.f32 %v163, 0.03125
    %v562 = vmul.f32 %v166, 0.03125
    %v563 = vmul.f32 %v169, 0.03125
    %v564 = vmul.f32 %v172, 0.03125
    %v565 = vmul.f32 %v175, 0.03125
    %v566 = vmul.f32 %v178, 0.03125
    %v567 = vmul.f32 %v181, 0.03125
    %v568 = vmul.f32 %v184, 0.03125
    %v569 = vmul.f32 %v187, 0.03125
    %v570 = vmul.f32 %v190, 0.03125
    %v571 = vmul.f32 %v193, 0.03125
    %v572 = vmul.f32 %v196, 0.03125
    %v573 = vmul.f32 %v199, 0.03125
    %v574 = vmul.f32 %v202, 0.03125
    %v575 = vmul.f32 %v205, 0.03125
    %v576 = vmul.f32 %v208, 0.03125
    %v577 = vmul.f32 %v211, 0.03125
    %v578 = vmul.f32 %v214, 0.03125
    %v579 = vmul.f32 %v217, 0.03125
    %v580 = vmul.f32 %v220, 0.03125
    %v581 = vmul.f32 %v223, 0.03125
    %v582 = vmul.f32 %v226, 0.03125
    %v583 = vmul.f32 %v229, 0.03125
    %v584 = vmul.f32 %v232, 0.03125
    %v585 = vmul.f32 %v235, 0.03125
    %v586 = vmul.f32 %v238, 0.03125
    %v587 = vmul.f32 %v241, 0.03125
    %v588 = vmul.f32 %v244, 0.03125
    %v589 = vmul.f32 %v247, 0.03125
    %v590 = vmul.f32 %v250, 0.03125
    %v591 = vmul.f32 %v253, 0.03125
    %v592 = vmul.f32 %v256, 0.03125
    %v593 = vmul.f32 %v259, 0.03125
    %v594 = vmul.f32 %v262, 0.03125
    %v595 = vmul.f32 %v265, 0.03125
    %v596 = vmul.f32 %v268, 0.03125
    %v597 = vmul.f32 %v271, 0.03125
    %v598 = vmul.f32 %v274, 0.03125
    %v599 = vmul.f32 %v277, 0.03125
    %v600 = vmul.f32 %v280, 0.03125
    %v601 = vmul.f32 %v347, 0.03125
    %v602 = vmul.f32 %v350, 0.03125
    %v603 = vmul.f32 %v353, 0.03125
    %v604 = vmul.f32 %v356, 0.03125
    %v605 = vmul.f32 %v359, 0.03125
    %v606 = vmul.f32 %v362, 0.03125
    %v607 = vmul.f32 %v365, 0.03125
    %v608 = vmul.f32 %v368, 0.03125
    %v609 = vmul.f32 %v371, 0.03125
    %v610 = vmul.f32 %v374, 0.03125
    %v611 = vmul.f32 %v377, 0.03125
    %v612 = vmul.f32 %v380, 0.03125
    %v613 = vmul.f32 %v383, 0.03125
    %v614 = vmul.f32 %v386, 0.03125
    %v615 = vmul.f32 %v389, 0.03125
    %v616 = vmul.f32 %v392, 0.03125
    %v617 = vmul.f32 %v395, 0.03125
    %v618 = vmul.f32 %v398, 0.03125
    %v619 = vmul.f32 %v401, 0.03125
    %v620 = vmul.f32 %v404, 0.03125
    %v621 = vmul.f32 %v407, 0.03125
    %v622 = vmul.f32 %v410, 0.03125
    %v623 = vmul.f32 %v413, 0.03125
    %v624 = vmul.f32 %v416, 0.03125
    %v625 = vmul.f32 %v419, 0.03125
    %v626 = vmul.f32 %v422, 0.03125
    %v627 = vmul.f32 %v425, 0.03125
    %v628 = vmul.f32 %v428, 0.03125
    %v629 = vmul.f32 %v431, 0.03125
    %v630 = vmul.f32 %v434, 0.03125
    %v631 = vmul.f32 %v437, 0.03125
    %v632 = vmul.f32 %v440, 0.03125
    %v633 = vmul.f32 %v443, 0.03125
    %v634 = vmul.f32 %v446, 0.03125
    %v635 = vmul.f32 %v449, 0.03125
    %v636 = vmul.f32 %v452, 0.03125
    %v637 = vmul.f32 %v455, 0.03125
    %v638 = vmul.f32 %v458, 0.03125
    %v639 = vmul.f32 %v461, 0.03125
    %v640 = vmul.f32 %v464, 0.03125
    %v641 = vmul.f32 %v467, 0.03125
    %v642 = vmul.f32 %v470, 0.03125
    %v643 = vmul.f32 %v473, 0.03125
    %v644 = vmul.f32 %v476, 0.03125
    %v645 = vmul.f32 %v479, 0.03125
    %v646 = vmul.f32 %v482, 0.03125
    %v647 = vmul.f32 %v485, 0.03125
    %v648 = vmul.f32 %v488, 0.03125
    %v649 = vmul.f32 %v491, 0.03125
    %v650 = vmul.f32 %v494, 0.03125
    %v651 = vmul.f32 %v497, 0.03125
    %v652 = vmul.f32 %v500, 0.03125
    %v653 = vmul.f32 %v503, 0.03125
    %v654 = vmul.f32 %v506, 0.03125
    %v655 = vmul.f32 %v509, 0.03125
    %v656 = vmul.f32 %v512, 0.03125
    %v657 = vmul.f32 %v515, 0.03125
    %v658 = vmul.f32 %v518, 0.03125
    %v659 = vmul.f32 %v521, 0.03125
    %v660 = vmul.f32 %v524, 0.03125
    %v661 = vmul.f32 %v527, 0.03125
    %v662 = vmul.f32 %v530, 0.03125
    %v663 = vmul.f32 %v533, 0.03125
    %v664 = vmul.f32 %v536, 0.03125
    %v665 = vmul.f32 %v537, %v537
    %v666 = vmul.f32 %v538, %v538
    %v667 = vmul.f32 %v539, %v539
    %v668 = vmul.f32 %v540, %v540
    %v669 = vmul.f32 %v541, %v541
    %v670 = vmul.f32 %v542, %v542
    %v671 = vmul.f32 %v543, %v543
    %v672 = vmul.f32 %v544, %v544
    %v673 = vmul.f32 %v545, %v545
    %v674 = vmul.f32 %v546, %v546
    %v675 = vmul.f32 %v547, %v547
    %v676 = vmul.f32 %v548, %v548
    %v677 = vmul.f32 %v549, %v549
    %v678 = vmul.f32 %v550, %v550
    %v679 = vmul.f32 %v551, %v551
    %v680 = vmul.f32 %v552, %v552
    %v681 = vmul.f32 %v553, %v553
    %v682 = vmul.f32 %v554, %v554
    %v683 = vmul.f32 %v555, %v555
    %v684 = vmul.f32 %v556, %v556
    %v685 = vmul.f32 %v557, %v557
    %v686 = vmul.f32 %v558, %v558
    %v687 = vmul.f32 %v559, %v559
    %v688 = vmul.f32 %v560, %v560
    %v689 = vmul.f32 %v561, %v561
    %v690 = vmul.f32 %v562, %v562
    %v691 = vmul.f32 %v563, %v563
    %v692 = vmul.f32 %v564, %v564
    %v693 = vmul.f32 %v565, %v565
    %v694 = vmul.f32 %v566, %v566
    %v695 = vmul.f32 %v567, %v567
    %v696 = vmul.f32 %v568, %v568
    %v697 = vmul.f32 %v569, %v569
    %v698 = vmul.f32 %v570, %v570
    %v699 = vmul.f32 %v571, %v571
    %v700 = vmul.f32 %v572, %v572
    %v701 = vmul.f32 %v573, %v573
    %v702 = vmul.f32 %v574, %v574
    %v703 = vmul.f32 %v575, %v575
    %v704 = vmul.f32 %v576, %v576
    %v705 = vmul.f32 %v577, %v577
    %v706 = vmul.f32 %v578, %v578
    %v707 = vmul.f32 %v579, %v579
    %v708 = vmul.f32 %v580, %v580
    %v709 = vmul.f32 %v581, %v581
    %v710 = vmul.f32 %v582, %v582
    %v711 = vmul.f32 %v583, %v583
    %v712 = vmul.f32 %v584, %v584
    %v713 = vmul.f32 %v585, %v585
    %v714 = vmul.f32 %v586, %v586
    %v715 = vmul.f32 %v587, %v587
    %v716 = vmul.f32 %v588, %v588
    %v717 = vmul.f32 %v589, %v589
    %v718 = vmul.f32 %v590, %v590
    %v719 = vmul.f32 %v591, %v591
    %v720 = vmul.f32 %v592, %v592
    %v721 = vmul.f32 %v593, %v593
    %v722 = vmul.f32 %v594, %v594
    %v723 = vmul.f32 %v595, %v595
    %v724 = vmul.f32 %v596, %v596
    %v725 = vmul.f32 %v597, %v597
    %v726 = vmul.f32 %v598, %v598
    %v727 = vmul.f32 %v599, %v599
    %v728 = vmul.f32 %v600, %v600
    %v729 = vsub.f32 %v601, %v665
    %v730 = vsub.f32 %v602, %v666
    %v731 = vsub.f32 %v603, %v667
    %v732 = vsub.f32 %v604, %v668
    %v733 = vsub.f32 %v605, %v669
    %v734 = vsub.f32 %v606, %v670
    %v735 = vsub.f32 %v607, %v671
    %v736 = vsub.f32 %v608, %v672
    %v737 = vsub.f32 %v609, %v673
    %v738 = vsub.f32 %v610, %v674
    %v739 = vsub.f32 %v611, %v675
    %v740 = vsub.f32 %v612, %v676
    %v741 = vsub.f32 %v613, %v677
    %v742 = vsub.f32 %v614, %v678
    %v743 = vsub.f32 %v615, %v679
    %v744 = vsub.f32 %v616, %v680
    %v745 = vsub.f32 %v617, %v681
    %v746 = vsub.f32 %v618, %v682
    %v747 = vsub.f32 %v619, %v683
    %v748 = vsub.f32 %v620, %v684
    %v749 = vsub.f32 %v621, %v685
    %v750 = vsub.f32 %v622, %v686
    %v751 = vsub.f32 %v623, %v687
    %v752 = vsub.f32 %v624, %v688
    %v753 = vsub.f32 %v625, %v689
    %v754 = vsub.f32 %v626, %v690
    %v755 = vsub.f32 %v627, %v691
    %v756 = vsub.f32 %v628, %v692
    %v757 = vsub.f32 %v629, %v693
    %v758 = vsub.f32 %v630, %v694
    %v759 = vsub.f32 %v631, %v695
    %v760 = vsub.f32 %v632, %v696
    %v761 = vsub.f32 %v633, %v697
    %v762 = vsub.f32 %v634, %v698
    %v763 = vsub.f32 %v635, %v699
    %v764 = vsub.f32 %v636, %v700
    %v765 = vsub.f32 %v637, %v701
    %v766 = vsub.f32 %v638, %v702
    %v767 = vsub.f32 %v639, %v703
    %v768 = vsub.f32 %v640, %v704
    %v769 = vsub.f32 %v641, %v705
    %v770 = vsub.f32 %v642, %v706
    %v771 = vsub.f32 %v643, %v707
    %v772 = vsub.f32 %v644, %v708
    %v773 = vsub.f32 %v645, %v709
    %v774 = vsub.f32 %v646, %v710
    %v775 = vsub.f32 %v647, %v711
    %v776 = vsub.f32 %v648, %v712
    %v777 = vsub.f32 %v649, %v713
    %v778 = vsub.f32 %v650, %v714
    %v779 = vsub.f32 %v651, %v715
    %v780 = vsub.f32 %v652, %v716
    %v781 = vsub.f32 %v653, %v717
    %v782 = vsub.f32 %v654, %v718
    %v783 = vsub.f32 %v655, %v719
    %v784 = vsub.f32 %v656, %v720
    %v785 = vsub.f32 %v657, %v721
    %v786 = vsub.f32 %v658, %v722
    %v787 = vsub.f32 %v659, %v723
    %v788 = vsub.f32 %v660, %v724
    %v789 = vsub.f32 %v661, %v725
    %v790 = vsub.f32 %v662, %v726
    %v791 = vsub.f32 %v663, %v727
    %v792 = vsub.f32 %v664, %v728
    %v793 = vadd.f32 %v729, 1e-05
    %v794 = vadd.f32 %v730, 1e-05
    %v795 = vadd.f32 %v731, 1e-05
    %v796 = vadd.f32 %v732, 1e-05
    %v797 = vadd.f32 %v733, 1e-05
    %v798 = vadd.f32 %v734, 1e-05
    %v799 = vadd.f32 %v735, 1e-05
    %v800 = vadd.f32 %v736, 1e-05
    %v801 = vadd.f32 %v737, 1e-05
    %v802 = vadd.f32 %v738, 1e-05
    %v803 = vadd.f32 %v739, 1e-05
    %v804 = vadd.f32 %v740, 1e-05
    %v805 = vadd.f32 %v741, 1e-05
    %v806 = vadd.f32 %v742, 1e-05
    %v807 = vadd.f32 %v743, 1e-05
    %v808 = vadd.f32 %v744, 1e-05
    %v809 = vadd.f32 %v745, 1e-05
    %v810 = vadd.f32 %v746, 1e-05
    %v811 = vadd.f32 %v747, 1e-05
    %v812 = vadd.f32 %v748, 1e-05
    %v813 = vadd.f32 %v749, 1e-05
    %v814 = vadd.f32 %v750, 1e-05
    %v815 = vadd.f32 %v751, 1e-05
    %v816 = vadd.f32 %v752, 1e-05
    %v817 = vadd.f32 %v753, 1e-05
    %v818 = vadd.f32 %v754, 1e-05
    %v819 = vadd.f32 %v755, 1e-05
    %v820 = vadd.f32 %v756, 1e-05
    %v821 = vadd.f32 %v757, 1e-05
    %v822 = vadd.f32 %v758, 1e-05
    %v823 = vadd.f32 %v759, 1e-05
    %v824 = vadd.f32 %v760, 1e-05
    %v825 = vadd.f32 %v761, 1e-05
    %v826 = vadd.f32 %v762, 1e-05
    %v827 = vadd.f32 %v763, 1e-05
    %v828 = vadd.f32 %v764, 1e-05
    %v829 = vadd.f32 %v765, 1e-05
    %v830 = vadd.f32 %v766, 1e-05
    %v831 = vadd.f32 %v767, 1e-05
    %v832 = vadd.f32 %v768, 1e-05
    %v833 = vadd.f32 %v769, 1e-05
    %v834 = vadd.f32 %v770, 1e-05
    %v835 = vadd.f32 %v771, 1e-05
    %v836 = vadd.f32 %v772, 1e-05
    %v837 = vadd.f32 %v773, 1e-05
    %v838 = vadd.f32 %v774, 1e-05
    %v839 = vadd.f32 %v775, 1e-05
    %v840 = vadd.f32 %v776, 1e-05
    %v841 = vadd.f32 %v777, 1e-05
    %v842 = vadd.f32 %v778, 1e-05
    %v843 = vadd.f32 %v779, 1e-05
    %v844 = vadd.f32 %v780, 1e-05
    %v845 = vadd.f32 %v781, 1e-05
    %v846 = vadd.f32 %v782, 1e-05
    %v847 = vadd.f32 %v783, 1e-05
    %v848 = vadd.f32 %v784, 1e-05
    %v849 = vadd.f32 %v785, 1e-05
    %v850 = vadd.f32 %v786, 1e-05
    %v851 = vadd.f32 %v787, 1e-05
    %v852 = vadd.f32 %v788, 1e-05
    %v853 = vadd.f32 %v789, 1e-05
    %v854 = vadd.f32 %v790, 1e-05
    %v855 = vadd.f32 %v791, 1e-05
    %v856 = vadd.f32 %v792, 1e-05
    %v857 = vrsqrt.pop %v793
    %v858 = vmul.f32 %v857, %v793
    %v859 = vmul.f32 %v858, %v857
    %v860 = vmul.f32 0.5, %v859
    %v861 = vsub.f32 1.5, %v860
    %v862 = vmul.f32 %v857, %v861
    %vm863 = vweird.f32 %v793
    %vm864 = vweird.f32 %v857
    %vm865 = vmor %vm863, %vm864
    %v866 = vsel %vm865, %v857, %v862
    %v867 = vrsqrt.pop %v794
    %v868 = vmul.f32 %v867, %v794
    %v869 = vmul.f32 %v868, %v867
    %v870 = vmul.f32 0.5, %v869
    %v871 = vsub.f32 1.5, %v870
    %v872 = vmul.f32 %v867, %v871
    %vm873 = vweird.f32 %v794
    %vm874 = vweird.f32 %v867
    %vm875 = vmor %vm873, %vm874
    %v876 = vsel %vm875, %v867, %v872
    %v877 = vrsqrt.pop %v795
    %v878 = vmul.f32 %v877, %v795
    %v879 = vmul.f32 %v878, %v877
    %v880 = vmul.f32 0.5, %v879
    %v881 = vsub.f32 1.5, %v880
    %v882 = vmul.f32 %v877, %v881
    %vm883 = vweird.f32 %v795
    %vm884 = vweird.f32 %v877
    %vm885 = vmor %vm883, %vm884
    %v886 = vsel %vm885, %v877, %v882
    %v887 = vrsqrt.pop %v796
    %v888 = vmul.f32 %v887, %v796
    %v889 = vmul.f32 %v888, %v887
    %v890 = vmul.f32 0.5, %v889
    %v891 = vsub.f32 1.5, %v890
    %v892 = vmul.f32 %v887, %v891
    %vm893 = vweird.f32 %v796
    %vm894 = vweird.f32 %v887
    %vm895 = vmor %vm893, %vm894
    %v896 = vsel %vm895, %v887, %v892
    %v897 = vrsqrt.pop %v797
    %v898 = vmul.f32 %v897, %v797
    %v899 = vmul.f32 %v898, %v897
    %v900 = vmul.f32 0.5, %v899
    %v901 = vsub.f32 1.5, %v900
    %v902 = vmul.f32 %v897, %v901
    %vm903 = vweird.f32 %v797
    %vm904 = vweird.f32 %v897
    %vm905 = vmor %vm903, %vm904
    %v906 = vsel %vm905, %v897, %v902
    %v907 = vrsqrt.pop %v798
    %v908 = vmul.f32 %v907, %v798
    %v909 = vmul.f32 %v908, %v907
    %v910 = vmul.f32 0.5, %v909
    %v911 = vsub.f32 1.5, %v910
    %v912 = vmul.f32 %v907, %v911
    %vm913 = vweird.f32 %v798
    %vm914 = vweird.f32 %v907
    %vm915 = vmor %vm913, %vm914
    %v916 = vsel %vm915, %v907, %v912
    %v917 = vrsqrt.pop %v799
    %v918 = vmul.f32 %v917, %v799
    %v919 = vmul.f32 %v918, %v917
    %v920 = vmul.f32 0.5, %v919
    %v921 = vsub.f32 1.5, %v920
    %v922 = vmul.f32 %v917, %v921
    %vm923 = vweird.f32 %v799
    %vm924 = vweird.f32 %v917
    %vm925 = vmor %vm923, %vm924
    %v926 = vsel %vm925, %v917, %v922
    %v927 = vrsqrt.pop %v800
    %v928 = vmul.f32 %v927, %v800
    %v929 = vmul.f32 %v928, %v927
    %v930 = vmul.f32 0.5, %v929
    %v931 = vsub.f32 1.5, %v930
    %v932 = vmul.f32 %v927, %v931
    %vm933 = vweird.f32 %v800
    %vm934 = vweird.f32 %v927
    %vm935 = vmor %vm933, %vm934
    %v936 = vsel %vm935, %v927, %v932
    %v937 = vrsqrt.pop %v801
    %v938 = vmul.f32 %v937, %v801
    %v939 = vmul.f32 %v938, %v937
    %v940 = vmul.f32 0.5, %v939
    %v941 = vsub.f32 1.5, %v940
    %v942 = vmul.f32 %v937, %v941
    %vm943 = vweird.f32 %v801
    %vm944 = vweird.f32 %v937
    %vm945 = vmor %vm943, %vm944
    %v946 = vsel %vm945, %v937, %v942
    %v947 = vrsqrt.pop %v802
    %v948 = vmul.f32 %v947, %v802
    %v949 = vmul.f32 %v948, %v947
    %v950 = vmul.f32 0.5, %v949
    %v951 = vsub.f32 1.5, %v950
    %v952 = vmul.f32 %v947, %v951
    %vm953 = vweird.f32 %v802
    %vm954 = vweird.f32 %v947
    %vm955 = vmor %vm953, %vm954
    %v956 = vsel %vm955, %v947, %v952
    %v957 = vrsqrt.pop %v803
    %v958 = vmul.f32 %v957, %v803
    %v959 = vmul.f32 %v958, %v957
    %v960 = vmul.f32 0.5, %v959
    %v961 = vsub.f32 1.5, %v960
    %v962 = vmul.f32 %v957, %v961
    %vm963 = vweird.f32 %v803
    %vm964 = vweird.f32 %v957
    %vm965 = vmor %vm963, %vm964
    %v966 = vsel %vm965, %v957, %v962
    %v967 = vrsqrt.pop %v804
    %v968 = vmul.f32 %v967, %v804
    %v969 = vmul.f32 %v968, %v967
    %v970 = vmul.f32 0.5, %v969
    %v971 = vsub.f32 1.5, %v970
    %v972 = vmul.f32 %v967, %v971
    %vm973 = vweird.f32 %v804
    %vm974 = vweird.f32 %v967
    %vm975 = vmor %vm973, %vm974
    %v976 = vsel %vm975, %v967, %v972
    %v977 = vrsqrt.pop %v805
    %v978 = vmul.f32 %v977, %v805
    %v979 = vmul.f32 %v978, %v977
    %v980 = vmul.f32 0.5, %v979
    %v981 = vsub.f32 1.5, %v980
    %v982 = vmul.f32 %v977, %v981
    %vm983 = vweird.f32 %v805
    %vm984 = vweird.f32 %v977
    %vm985 = vmor %vm983, %vm984
    %v986 = vsel %vm985, %v977, %v982
    %v987 = vrsqrt.pop %v806
    %v988 = vmul.f32 %v987, %v806
    %v989 = vmul.f32 %v988, %v987
    %v990 = vmul.f32 0.5, %v989
    %v991 = vsub.f32 1.5, %v990
    %v992 = vmul.f32 %v987, %v991
    %vm993 = vweird.f32 %v806
    %vm994 = vweird.f32 %v987
    %vm995 = vmor %vm993, %vm994
    %v996 = vsel %vm995, %v987, %v992
    %v997 = vrsqrt.pop %v807
    %v998 = vmul.f32 %v997, %v807
    %v999 = vmul.f32 %v998, %v997
    %v1000 = vmul.f32 0.5, %v999
    %v1001 = vsub.f32 1.5, %v1000
    %v1002 = vmul.f32 %v997, %v1001
    %vm1003 = vweird.f32 %v807
    %vm1004 = vweird.f32 %v997
    %vm1005 = vmor %vm1003, %vm1004
    %v1006 = vsel %vm1005, %v997, %v1002
    %v1007 = vrsqrt.pop %v808
    %v1008 = vmul.f32 %v1007, %v808
    %v1009 = vmul.f32 %v1008, %v1007
    %v1010 = vmul.f32 0.5, %v1009
    %v1011 = vsub.f32 1.5, %v1010
    %v1012 = vmul.f32 %v1007, %v1011
    %vm1013 = vweird.f32 %v808
    %vm1014 = vweird.f32 %v1007
    %vm1015 = vmor %vm1013, %vm1014
    %v1016 = vsel %vm1015, %v1007, %v1012
    %v1017 = vrsqrt.pop %v809
    %v1018 = vmul.f32 %v1017, %v809
    %v1019 = vmul.f32 %v1018, %v1017
    %v1020 = vmul.f32 0.5, %v1019
    %v1021 = vsub.f32 1.5, %v1020
    %v1022 = vmul.f32 %v1017, %v1021
    %vm1023 = vweird.f32 %v809
    %vm1024 = vweird.f32 %v1017
    %vm1025 = vmor %vm1023, %vm1024
    %v1026 = vsel %vm1025, %v1017, %v1022
    %v1027 = vrsqrt.pop %v810
    %v1028 = vmul.f32 %v1027, %v810
    %v1029 = vmul.f32 %v1028, %v1027
    %v1030 = vmul.f32 0.5, %v1029
    %v1031 = vsub.f32 1.5, %v1030
    %v1032 = vmul.f32 %v1027, %v1031
    %vm1033 = vweird.f32 %v810
    %vm1034 = vweird.f32 %v1027
    %vm1035 = vmor %vm1033, %vm1034
    %v1036 = vsel %vm1035, %v1027, %v1032
    %v1037 = vrsqrt.pop %v811
    %v1038 = vmul.f32 %v1037, %v811
    %v1039 = vmul.f32 %v1038, %v1037
    %v1040 = vmul.f32 0.5, %v1039
    %v1041 = vsub.f32 1.5, %v1040
    %v1042 = vmul.f32 %v1037, %v1041
    %vm1043 = vweird.f32 %v811
    %vm1044 = vweird.f32 %v1037
    %vm1045 = vmor %vm1043, %vm1044
    %v1046 = vsel %vm1045, %v1037, %v1042
    %v1047 = vrsqrt.pop %v812
    %v1048 = vmul.f32 %v1047, %v812
    %v1049 = vmul.f32 %v1048, %v1047
    %v1050 = vmul.f32 0.5, %v1049
    %v1051 = vsub.f32 1.5, %v1050
    %v1052 = vmul.f32 %v1047, %v1051
    %vm1053 = vweird.f32 %v812
    %vm1054 = vweird.f32 %v1047
    %vm1055 = vmor %vm1053, %vm1054
    %v1056 = vsel %vm1055, %v1047, %v1052
    %v1057 = vrsqrt.pop %v813
    %v1058 = vmul.f32 %v1057, %v813
    %v1059 = vmul.f32 %v1058, %v1057
    %v1060 = vmul.f32 0.5, %v1059
    %v1061 = vsub.f32 1.5, %v1060
    %v1062 = vmul.f32 %v1057, %v1061
    %vm1063 = vweird.f32 %v813
    %vm1064 = vweird.f32 %v1057
    %vm1065 = vmor %vm1063, %vm1064
    %v1066 = vsel %vm1065, %v1057, %v1062
    %v1067 = vrsqrt.pop %v814
    %v1068 = vmul.f32 %v1067, %v814
    %v1069 = vmul.f32 %v1068, %v1067
    %v1070 = vmul.f32 0.5, %v1069
    %v1071 = vsub.f32 1.5, %v1070
    %v1072 = vmul.f32 %v1067, %v1071
    %vm1073 = vweird.f32 %v814
    %vm1074 = vweird.f32 %v1067
    %vm1075 = vmor %vm1073, %vm1074
    %v1076 = vsel %vm1075, %v1067, %v1072
    %v1077 = vrsqrt.pop %v815
    %v1078 = vmul.f32 %v1077, %v815
    %v1079 = vmul.f32 %v1078, %v1077
    %v1080 = vmul.f32 0.5, %v1079
    %v1081 = vsub.f32 1.5, %v1080
    %v1082 = vmul.f32 %v1077, %v1081
    %vm1083 = vweird.f32 %v815
    %vm1084 = vweird.f32 %v1077
    %vm1085 = vmor %vm1083, %vm1084
    %v1086 = vsel %vm1085, %v1077, %v1082
    %v1087 = vrsqrt.pop %v816
    %v1088 = vmul.f32 %v1087, %v816
    %v1089 = vmul.f32 %v1088, %v1087
    %v1090 = vmul.f32 0.5, %v1089
    %v1091 = vsub.f32 1.5, %v1090
    %v1092 = vmul.f32 %v1087, %v1091
    %vm1093 = vweird.f32 %v816
    %vm1094 = vweird.f32 %v1087
    %vm1095 = vmor %vm1093, %vm1094
    %v1096 = vsel %vm1095, %v1087, %v1092
    %v1097 = vrsqrt.pop %v817
    %v1098 = vmul.f32 %v1097, %v817
    %v1099 = vmul.f32 %v1098, %v1097
    %v1100 = vmul.f32 0.5, %v1099
    %v1101 = vsub.f32 1.5, %v1100
    %v1102 = vmul.f32 %v1097, %v1101
    %vm1103 = vweird.f32 %v817
    %vm1104 = vweird.f32 %v1097
    %vm1105 = vmor %vm1103, %vm1104
    %v1106 = vsel %vm1105, %v1097, %v1102
    %v1107 = vrsqrt.pop %v818
    %v1108 = vmul.f32 %v1107, %v818
    %v1109 = vmul.f32 %v1108, %v1107
    %v1110 = vmul.f32 0.5, %v1109
    %v1111 = vsub.f32 1.5, %v1110
    %v1112 = vmul.f32 %v1107, %v1111
    %vm1113 = vweird.f32 %v818
    %vm1114 = vweird.f32 %v1107
    %vm1115 = vmor %vm1113, %vm1114
    %v1116 = vsel %vm1115, %v1107, %v1112
    %v1117 = vrsqrt.pop %v819
    %v1118 = vmul.f32 %v1117, %v819
    %v1119 = vmul.f32 %v1118, %v1117
    %v1120 = vmul.f32 0.5, %v1119
    %v1121 = vsub.f32 1.5, %v1120
    %v1122 = vmul.f32 %v1117, %v1121
    %vm1123 = vweird.f32 %v819
    %vm1124 = vweird.f32 %v1117
    %vm1125 = vmor %vm1123, %vm1124
    %v1126 = vsel %vm1125, %v1117, %v1122
    %v1127 = vrsqrt.pop %v820
    %v1128 = vmul.f32 %v1127, %v820
    %v1129 = vmul.f32 %v1128, %v1127
    %v1130 = vmul.f32 0.5, %v1129
    %v1131 = vsub.f32 1.5, %v1130
    %v1132 = vmul.f32 %v1127, %v1131
    %vm1133 = vweird.f32 %v820
    %vm1134 = vweird.f32 %v1127
    %vm1135 = vmor %vm1133, %vm1134
    %v1136 = vsel %vm1135, %v1127, %v1132
    %v1137 = vrsqrt.pop %v821
    %v1138 = vmul.f32 %v1137, %v821
    %v1139 = vmul.f32 %v1138, %v1137
    %v1140 = vmul.f32 0.5, %v1139
    %v1141 = vsub.f32 1.5, %v1140
    %v1142 = vmul.f32 %v1137, %v1141
    %vm1143 = vweird.f32 %v821
    %vm1144 = vweird.f32 %v1137
    %vm1145 = vmor %vm1143, %vm1144
    %v1146 = vsel %vm1145, %v1137, %v1142
    %v1147 = vrsqrt.pop %v822
    %v1148 = vmul.f32 %v1147, %v822
    %v1149 = vmul.f32 %v1148, %v1147
    %v1150 = vmul.f32 0.5, %v1149
    %v1151 = vsub.f32 1.5, %v1150
    %v1152 = vmul.f32 %v1147, %v1151
    %vm1153 = vweird.f32 %v822
    %vm1154 = vweird.f32 %v1147
    %vm1155 = vmor %vm1153, %vm1154
    %v1156 = vsel %vm1155, %v1147, %v1152
    %v1157 = vrsqrt.pop %v823
    %v1158 = vmul.f32 %v1157, %v823
    %v1159 = vmul.f32 %v1158, %v1157
    %v1160 = vmul.f32 0.5, %v1159
    %v1161 = vsub.f32 1.5, %v1160
    %v1162 = vmul.f32 %v1157, %v1161
    %vm1163 = vweird.f32 %v823
    %vm1164 = vweird.f32 %v1157
    %vm1165 = vmor %vm1163, %vm1164
    %v1166 = vsel %vm1165, %v1157, %v1162
    %v1167 = vrsqrt.pop %v824
    %v1168 = vmul.f32 %v1167, %v824
    %v1169 = vmul.f32 %v1168, %v1167
    %v1170 = vmul.f32 0.5, %v1169
    %v1171 = vsub.f32 1.5, %v1170
    %v1172 = vmul.f32 %v1167, %v1171
    %vm1173 = vweird.f32 %v824
    %vm1174 = vweird.f32 %v1167
    %vm1175 = vmor %vm1173, %vm1174
    %v1176 = vsel %vm1175, %v1167, %v1172
    %v1177 = vrsqrt.pop %v825
    %v1178 = vmul.f32 %v1177, %v825
    %v1179 = vmul.f32 %v1178, %v1177
    %v1180 = vmul.f32 0.5, %v1179
    %v1181 = vsub.f32 1.5, %v1180
    %v1182 = vmul.f32 %v1177, %v1181
    %vm1183 = vweird.f32 %v825
    %vm1184 = vweird.f32 %v1177
    %vm1185 = vmor %vm1183, %vm1184
    %v1186 = vsel %vm1185, %v1177, %v1182
    %v1187 = vrsqrt.pop %v826
    %v1188 = vmul.f32 %v1187, %v826
    %v1189 = vmul.f32 %v1188, %v1187
    %v1190 = vmul.f32 0.5, %v1189
    %v1191 = vsub.f32 1.5, %v1190
    %v1192 = vmul.f32 %v1187, %v1191
    %vm1193 = vweird.f32 %v826
    %vm1194 = vweird.f32 %v1187
    %vm1195 = vmor %vm1193, %vm1194
    %v1196 = vsel %vm1195, %v1187, %v1192
    %v1197 = vrsqrt.pop %v827
    %v1198 = vmul.f32 %v1197, %v827
    %v1199 = vmul.f32 %v1198, %v1197
    %v1200 = vmul.f32 0.5, %v1199
    %v1201 = vsub.f32 1.5, %v1200
    %v1202 = vmul.f32 %v1197, %v1201
    %vm1203 = vweird.f32 %v827
    %vm1204 = vweird.f32 %v1197
    %vm1205 = vmor %vm1203, %vm1204
    %v1206 = vsel %vm1205, %v1197, %v1202
    %v1207 = vrsqrt.pop %v828
    %v1208 = vmul.f32 %v1207, %v828
    %v1209 = vmul.f32 %v1208, %v1207
    %v1210 = vmul.f32 0.5, %v1209
    %v1211 = vsub.f32 1.5, %v1210
    %v1212 = vmul.f32 %v1207, %v1211
    %vm1213 = vweird.f32 %v828
    %vm1214 = vweird.f32 %v1207
    %vm1215 = vmor %vm1213, %vm1214
    %v1216 = vsel %vm1215, %v1207, %v1212
    %v1217 = vrsqrt.pop %v829
    %v1218 = vmul.f32 %v1217, %v829
    %v1219 = vmul.f32 %v1218, %v1217
    %v1220 = vmul.f32 0.5, %v1219
    %v1221 = vsub.f32 1.5, %v1220
    %v1222 = vmul.f32 %v1217, %v1221
    %vm1223 = vweird.f32 %v829
    %vm1224 = vweird.f32 %v1217
    %vm1225 = vmor %vm1223, %vm1224
    %v1226 = vsel %vm1225, %v1217, %v1222
    %v1227 = vrsqrt.pop %v830
    %v1228 = vmul.f32 %v1227, %v830
    %v1229 = vmul.f32 %v1228, %v1227
    %v1230 = vmul.f32 0.5, %v1229
    %v1231 = vsub.f32 1.5, %v1230
    %v1232 = vmul.f32 %v1227, %v1231
    %vm1233 = vweird.f32 %v830
    %vm1234 = vweird.f32 %v1227
    %vm1235 = vmor %vm1233, %vm1234
    %v1236 = vsel %vm1235, %v1227, %v1232
    %v1237 = vrsqrt.pop %v831
    %v1238 = vmul.f32 %v1237, %v831
    %v1239 = vmul.f32 %v1238, %v1237
    %v1240 = vmul.f32 0.5, %v1239
    %v1241 = vsub.f32 1.5, %v1240
    %v1242 = vmul.f32 %v1237, %v1241
    %vm1243 = vweird.f32 %v831
    %vm1244 = vweird.f32 %v1237
    %vm1245 = vmor %vm1243, %vm1244
    %v1246 = vsel %vm1245, %v1237, %v1242
    %v1247 = vrsqrt.pop %v832
    %v1248 = vmul.f32 %v1247, %v832
    %v1249 = vmul.f32 %v1248, %v1247
    %v1250 = vmul.f32 0.5, %v1249
    %v1251 = vsub.f32 1.5, %v1250
    %v1252 = vmul.f32 %v1247, %v1251
    %vm1253 = vweird.f32 %v832
    %vm1254 = vweird.f32 %v1247
    %vm1255 = vmor %vm1253, %vm1254
    %v1256 = vsel %vm1255, %v1247, %v1252
    %v1257 = vrsqrt.pop %v833
    %v1258 = vmul.f32 %v1257, %v833
    %v1259 = vmul.f32 %v1258, %v1257
    %v1260 = vmul.f32 0.5, %v1259
    %v1261 = vsub.f32 1.5, %v1260
    %v1262 = vmul.f32 %v1257, %v1261
    %vm1263 = vweird.f32 %v833
    %vm1264 = vweird.f32 %v1257
    %vm1265 = vmor %vm1263, %vm1264
    %v1266 = vsel %vm1265, %v1257, %v1262
    %v1267 = vrsqrt.pop %v834
    %v1268 = vmul.f32 %v1267, %v834
    %v1269 = vmul.f32 %v1268, %v1267
    %v1270 = vmul.f32 0.5, %v1269
    %v1271 = vsub.f32 1.5, %v1270
    %v1272 = vmul.f32 %v1267, %v1271
    %vm1273 = vweird.f32 %v834
    %vm1274 = vweird.f32 %v1267
    %vm1275 = vmor %vm1273, %vm1274
    %v1276 = vsel %vm1275, %v1267, %v1272
    %v1277 = vrsqrt.pop %v835
    %v1278 = vmul.f32 %v1277, %v835
    %v1279 = vmul.f32 %v1278, %v1277
    %v1280 = vmul.f32 0.5, %v1279
    %v1281 = vsub.f32 1.5, %v1280
    %v1282 = vmul.f32 %v1277, %v1281
    %vm1283 = vweird.f32 %v835
    %vm1284 = vweird.f32 %v1277
    %vm1285 = vmor %vm1283, %vm1284
    %v1286 = vsel %vm1285, %v1277, %v1282
    %v1287 = vrsqrt.pop %v836
    %v1288 = vmul.f32 %v1287, %v836
    %v1289 = vmul.f32 %v1288, %v1287
    %v1290 = vmul.f32 0.5, %v1289
    %v1291 = vsub.f32 1.5, %v1290
    %v1292 = vmul.f32 %v1287, %v1291
    %vm1293 = vweird.f32 %v836
    %vm1294 = vweird.f32 %v1287
    %vm1295 = vmor %vm1293, %vm1294
    %v1296 = vsel %vm1295, %v1287, %v1292
    %v1297 = vrsqrt.pop %v837
    %v1298 = vmul.f32 %v1297, %v837
    %v1299 = vmul.f32 %v1298, %v1297
    %v1300 = vmul.f32 0.5, %v1299
    %v1301 = vsub.f32 1.5, %v1300
    %v1302 = vmul.f32 %v1297, %v1301
    %vm1303 = vweird.f32 %v837
    %vm1304 = vweird.f32 %v1297
    %vm1305 = vmor %vm1303, %vm1304
    %v1306 = vsel %vm1305, %v1297, %v1302
    %v1307 = vrsqrt.pop %v838
    %v1308 = vmul.f32 %v1307, %v838
    %v1309 = vmul.f32 %v1308, %v1307
    %v1310 = vmul.f32 0.5, %v1309
    %v1311 = vsub.f32 1.5, %v1310
    %v1312 = vmul.f32 %v1307, %v1311
    %vm1313 = vweird.f32 %v838
    %vm1314 = vweird.f32 %v1307
    %vm1315 = vmor %vm1313, %vm1314
    %v1316 = vsel %vm1315, %v1307, %v1312
    %v1317 = vrsqrt.pop %v839
    %v1318 = vmul.f32 %v1317, %v839
    %v1319 = vmul.f32 %v1318, %v1317
    %v1320 = vmul.f32 0.5, %v1319
    %v1321 = vsub.f32 1.5, %v1320
    %v1322 = vmul.f32 %v1317, %v1321
    %vm1323 = vweird.f32 %v839
    %vm1324 = vweird.f32 %v1317
    %vm1325 = vmor %vm1323, %vm1324
    %v1326 = vsel %vm1325, %v1317, %v1322
    %v1327 = vrsqrt.pop %v840
    %v1328 = vmul.f32 %v1327, %v840
    %v1329 = vmul.f32 %v1328, %v1327
    %v1330 = vmul.f32 0.5, %v1329
    %v1331 = vsub.f32 1.5, %v1330
    %v1332 = vmul.f32 %v1327, %v1331
    %vm1333 = vweird.f32 %v840
    %vm1334 = vweird.f32 %v1327
    %vm1335 = vmor %vm1333, %vm1334
    %v1336 = vsel %vm1335, %v1327, %v1332
    %v1337 = vrsqrt.pop %v841
    %v1338 = vmul.f32 %v1337, %v841
    %v1339 = vmul.f32 %v1338, %v1337
    %v1340 = vmul.f32 0.5, %v1339
    %v1341 = vsub.f32 1.5, %v1340
    %v1342 = vmul.f32 %v1337, %v1341
    %vm1343 = vweird.f32 %v841
    %vm1344 = vweird.f32 %v1337
    %vm1345 = vmor %vm1343, %vm1344
    %v1346 = vsel %vm1345, %v1337, %v1342
    %v1347 = vrsqrt.pop %v842
    %v1348 = vmul.f32 %v1347, %v842
    %v1349 = vmul.f32 %v1348, %v1347
    %v1350 = vmul.f32 0.5, %v1349
    %v1351 = vsub.f32 1.5, %v1350
    %v1352 = vmul.f32 %v1347, %v1351
    %vm1353 = vweird.f32 %v842
    %vm1354 = vweird.f32 %v1347
    %vm1355 = vmor %vm1353, %vm1354
    %v1356 = vsel %vm1355, %v1347, %v1352
    %v1357 = vrsqrt.pop %v843
    %v1358 = vmul.f32 %v1357, %v843
    %v1359 = vmul.f32 %v1358, %v1357
    %v1360 = vmul.f32 0.5, %v1359
    %v1361 = vsub.f32 1.5, %v1360
    %v1362 = vmul.f32 %v1357, %v1361
    %vm1363 = vweird.f32 %v843
    %vm1364 = vweird.f32 %v1357
    %vm1365 = vmor %vm1363, %vm1364
    %v1366 = vsel %vm1365, %v1357, %v1362
    %v1367 = vrsqrt.pop %v844
    %v1368 = vmul.f32 %v1367, %v844
    %v1369 = vmul.f32 %v1368, %v1367
    %v1370 = vmul.f32 0.5, %v1369
    %v1371 = vsub.f32 1.5, %v1370
    %v1372 = vmul.f32 %v1367, %v1371
    %vm1373 = vweird.f32 %v844
    %vm1374 = vweird.f32 %v1367
    %vm1375 = vmor %vm1373, %vm1374
    %v1376 = vsel %vm1375, %v1367, %v1372
    %v1377 = vrsqrt.pop %v845
    %v1378 = vmul.f32 %v1377, %v845
    %v1379 = vmul.f32 %v1378, %v1377
    %v1380 = vmul.f32 0.5, %v1379
    %v1381 = vsub.f32 1.5, %v1380
    %v1382 = vmul.f32 %v1377, %v1381
    %vm1383 = vweird.f32 %v845
    %vm1384 = vweird.f32 %v1377
    %vm1385 = vmor %vm1383, %vm1384
    %v1386 = vsel %vm1385, %v1377, %v1382
    %v1387 = vrsqrt.pop %v846
    %v1388 = vmul.f32 %v1387, %v846
    %v1389 = vmul.f32 %v1388, %v1387
    %v1390 = vmul.f32 0.5, %v1389
    %v1391 = vsub.f32 1.5, %v1390
    %v1392 = vmul.f32 %v1387, %v1391
    %vm1393 = vweird.f32 %v846
    %vm1394 = vweird.f32 %v1387
    %vm1395 = vmor %vm1393, %vm1394
    %v1396 = vsel %vm1395, %v1387, %v1392
    %v1397 = vrsqrt.pop %v847
    %v1398 = vmul.f32 %v1397, %v847
    %v1399 = vmul.f32 %v1398, %v1397
    %v1400 = vmul.f32 0.5, %v1399
    %v1401 = vsub.f32 1.5, %v1400
    %v1402 = vmul.f32 %v1397, %v1401
    %vm1403 = vweird.f32 %v847
    %vm1404 = vweird.f32 %v1397
    %vm1405 = vmor %vm1403, %vm1404
    %v1406 = vsel %vm1405, %v1397, %v1402
    %v1407 = vrsqrt.pop %v848
    %v1408 = vmul.f32 %v1407, %v848
    %v1409 = vmul.f32 %v1408, %v1407
    %v1410 = vmul.f32 0.5, %v1409
    %v1411 = vsub.f32 1.5, %v1410
    %v1412 = vmul.f32 %v1407, %v1411
    %vm1413 = vweird.f32 %v848
    %vm1414 = vweird.f32 %v1407
    %vm1415 = vmor %vm1413, %vm1414
    %v1416 = vsel %vm1415, %v1407, %v1412
    %v1417 = vrsqrt.pop %v849
    %v1418 = vmul.f32 %v1417, %v849
    %v1419 = vmul.f32 %v1418, %v1417
    %v1420 = vmul.f32 0.5, %v1419
    %v1421 = vsub.f32 1.5, %v1420
    %v1422 = vmul.f32 %v1417, %v1421
    %vm1423 = vweird.f32 %v849
    %vm1424 = vweird.f32 %v1417
    %vm1425 = vmor %vm1423, %vm1424
    %v1426 = vsel %vm1425, %v1417, %v1422
    %v1427 = vrsqrt.pop %v850
    %v1428 = vmul.f32 %v1427, %v850
    %v1429 = vmul.f32 %v1428, %v1427
    %v1430 = vmul.f32 0.5, %v1429
    %v1431 = vsub.f32 1.5, %v1430
    %v1432 = vmul.f32 %v1427, %v1431
    %vm1433 = vweird.f32 %v850
    %vm1434 = vweird.f32 %v1427
    %vm1435 = vmor %vm1433, %vm1434
    %v1436 = vsel %vm1435, %v1427, %v1432
    %v1437 = vrsqrt.pop %v851
    %v1438 = vmul.f32 %v1437, %v851
    %v1439 = vmul.f32 %v1438, %v1437
    %v1440 = vmul.f32 0.5, %v1439
    %v1441 = vsub.f32 1.5, %v1440
    %v1442 = vmul.f32 %v1437, %v1441
    %vm1443 = vweird.f32 %v851
    %vm1444 = vweird.f32 %v1437
    %vm1445 = vmor %vm1443, %vm1444
    %v1446 = vsel %vm1445, %v1437, %v1442
    %v1447 = vrsqrt.pop %v852
    %v1448 = vmul.f32 %v1447, %v852
    %v1449 = vmul.f32 %v1448, %v1447
    %v1450 = vmul.f32 0.5, %v1449
    %v1451 = vsub.f32 1.5, %v1450
    %v1452 = vmul.f32 %v1447, %v1451
    %vm1453 = vweird.f32 %v852
    %vm1454 = vweird.f32 %v1447
    %vm1455 = vmor %vm1453, %vm1454
    %v1456 = vsel %vm1455, %v1447, %v1452
    %v1457 = vrsqrt.pop %v853
    %v1458 = vmul.f32 %v1457, %v853
    %v1459 = vmul.f32 %v1458, %v1457
    %v1460 = vmul.f32 0.5, %v1459
    %v1461 = vsub.f32 1.5, %v1460
    %v1462 = vmul.f32 %v1457, %v1461
    %vm1463 = vweird.f32 %v853
    %vm1464 = vweird.f32 %v1457
    %vm1465 = vmor %vm1463, %vm1464
    %v1466 = vsel %vm1465, %v1457, %v1462
    %v1467 = vrsqrt.pop %v854
    %v1468 = vmul.f32 %v1467, %v854
    %v1469 = vmul.f32 %v1468, %v1467
    %v1470 = vmul.f32 0.5, %v1469
    %v1471 = vsub.f32 1.5, %v1470
    %v1472 = vmul.f32 %v1467, %v1471
    %vm1473 = vweird.f32 %v854
    %vm1474 = vweird.f32 %v1467
    %vm1475 = vmor %vm1473, %vm1474
    %v1476 = vsel %vm1475, %v1467, %v1472
    %v1477 = vrsqrt.pop %v855
    %v1478 = vmul.f32 %v1477, %v855
    %v1479 = vmul.f32 %v1478, %v1477
    %v1480 = vmul.f32 0.5, %v1479
    %v1481 = vsub.f32 1.5, %v1480
    %v1482 = vmul.f32 %v1477, %v1481
    %vm1483 = vweird.f32 %v855
    %vm1484 = vweird.f32 %v1477
    %vm1485 = vmor %vm1483, %vm1484
    %v1486 = vsel %vm1485, %v1477, %v1482
    %v1487 = vrsqrt.pop %v856
    %v1488 = vmul.f32 %v1487, %v856
    %v1489 = vmul.f32 %v1488, %v1487
    %v1490 = vmul.f32 0.5, %v1489
    %v1491 = vsub.f32 1.5, %v1490
    %v1492 = vmul.f32 %v1487, %v1491
    %vm1493 = vweird.f32 %v856
    %vm1494 = vweird.f32 %v1487
    %vm1495 = vmor %vm1493, %vm1494
    %v1496 = vsel %vm1495, %v1487, %v1492
    %v1497 = vsub.f32 %v24, %v537
    %v1498 = vsub.f32 %v25, %v538
    %v1499 = vsub.f32 %v26, %v539
    %v1500 = vsub.f32 %v27, %v540
    %v1501 = vsub.f32 %v28, %v541
    %v1502 = vsub.f32 %v29, %v542
    %v1503 = vsub.f32 %v30, %v543
    %v1504 = vsub.f32 %v31, %v544
    %v1505 = vsub.f32 %v32, %v545
    %v1506 = vsub.f32 %v33, %v546
    %v1507 = vsub.f32 %v34, %v547
    %v1508 = vsub.f32 %v35, %v548
    %v1509 = vsub.f32 %v36, %v549
    %v1510 = vsub.f32 %v37, %v550
    %v1511 = vsub.f32 %v38, %v551
    %v1512 = vsub.f32 %v39, %v552
    %v1513 = vsub.f32 %v40, %v553
    %v1514 = vsub.f32 %v41, %v554
    %v1515 = vsub.f32 %v42, %v555
    %v1516 = vsub.f32 %v43, %v556
    %v1517 = vsub.f32 %v44, %v557
    %v1518 = vsub.f32 %v45, %v558
    %v1519 = vsub.f32 %v46, %v559
    %v1520 = vsub.f32 %v47, %v560
    %v1521 = vsub.f32 %v48, %v561
    %v1522 = vsub.f32 %v49, %v562
    %v1523 = vsub.f32 %v50, %v563
    %v1524 = vsub.f32 %v51, %v564
    %v1525 = vsub.f32 %v52, %v565
    %v1526 = vsub.f32 %v53, %v566
    %v1527 = vsub.f32 %v54, %v567
    %v1528 = vsub.f32 %v55, %v568
    %v1529 = vsub.f32 %v56, %v569
    %v1530 = vsub.f32 %v57, %v570
    %v1531 = vsub.f32 %v58, %v571
    %v1532 = vsub.f32 %v59, %v572
    %v1533 = vsub.f32 %v60, %v573
    %v1534 = vsub.f32 %v61, %v574
    %v1535 = vsub.f32 %v62, %v575
    %v1536 = vsub.f32 %v63, %v576
    %v1537 = vsub.f32 %v64, %v577
    %v1538 = vsub.f32 %v65, %v578
    %v1539 = vsub.f32 %v66, %v579
    %v1540 = vsub.f32 %v67, %v580
    %v1541 = vsub.f32 %v68, %v581
    %v1542 = vsub.f32 %v69, %v582
    %v1543 = vsub.f32 %v70, %v583
    %v1544 = vsub.f32 %v71, %v584
    %v1545 = vsub.f32 %v72, %v585
    %v1546 = vsub.f32 %v73, %v586
    %v1547 = vsub.f32 %v74, %v587
    %v1548 = vsub.f32 %v75, %v588
    %v1549 = vsub.f32 %v76, %v589
    %v1550 = vsub.f32 %v77, %v590
    %v1551 = vsub.f32 %v78, %v591
    %v1552 = vsub.f32 %v79, %v592
    %v1553 = vsub.f32 %v80, %v593
    %v1554 = vsub.f32 %v81, %v594
    %v1555 = vsub.f32 %v82, %v595
    %v1556 = vsub.f32 %v83, %v596
    %v1557 = vsub.f32 %v84, %v597
    %v1558 = vsub.f32 %v85, %v598
    %v1559 = vsub.f32 %v86, %v599
    %v1560 = vsub.f32 %v87, %v600
    %v1561 = vmul.f32 %v1497, %v866
    %v1562 = vmul.f32 %v1498, %v876
    %v1563 = vmul.f32 %v1499, %v886
    %v1564 = vmul.f32 %v1500, %v896
    %v1565 = vmul.f32 %v1501, %v906
    %v1566 = vmul.f32 %v1502, %v916
    %v1567 = vmul.f32 %v1503, %v926
    %v1568 = vmul.f32 %v1504, %v936
    %v1569 = vmul.f32 %v1505, %v946
    %v1570 = vmul.f32 %v1506, %v956
    %v1571 = vmul.f32 %v1507, %v966
    %v1572 = vmul.f32 %v1508, %v976
    %v1573 = vmul.f32 %v1509, %v986
    %v1574 = vmul.f32 %v1510, %v996
    %v1575 = vmul.f32 %v1511, %v1006
    %v1576 = vmul.f32 %v1512, %v1016
    %v1577 = vmul.f32 %v1513, %v1026
    %v1578 = vmul.f32 %v1514, %v1036
    %v1579 = vmul.f32 %v1515, %v1046
    %v1580 = vmul.f32 %v1516, %v1056
    %v1581 = vmul.f32 %v1517, %v1066
    %v1582 = vmul.f32 %v1518, %v1076
    %v1583 = vmul.f32 %v1519, %v1086
    %v1584 = vmul.f32 %v1520, %v1096
    %v1585 = vmul.f32 %v1521, %v1106
    %v1586 = vmul.f32 %v1522, %v1116
    %v1587 = vmul.f32 %v1523, %v1126
    %v1588 = vmul.f32 %v1524, %v1136
    %v1589 = vmul.f32 %v1525, %v1146
    %v1590 = vmul.f32 %v1526, %v1156
    %v1591 = vmul.f32 %v1527, %v1166
    %v1592 = vmul.f32 %v1528, %v1176
    %v1593 = vmul.f32 %v1529, %v1186
    %v1594 = vmul.f32 %v1530, %v1196
    %v1595 = vmul.f32 %v1531, %v1206
    %v1596 = vmul.f32 %v1532, %v1216
    %v1597 = vmul.f32 %v1533, %v1226
    %v1598 = vmul.f32 %v1534, %v1236
    %v1599 = vmul.f32 %v1535, %v1246
    %v1600 = vmul.f32 %v1536, %v1256
    %v1601 = vmul.f32 %v1537, %v1266
    %v1602 = vmul.f32 %v1538, %v1276
    %v1603 = vmul.f32 %v1539, %v1286
    %v1604 = vmul.f32 %v1540, %v1296
    %v1605 = vmul.f32 %v1541, %v1306
    %v1606 = vmul.f32 %v1542, %v1316
    %v1607 = vmul.f32 %v1543, %v1326
    %v1608 = vmul.f32 %v1544, %v1336
    %v1609 = vmul.f32 %v1545, %v1346
    %v1610 = vmul.f32 %v1546, %v1356
    %v1611 = vmul.f32 %v1547, %v1366
    %v1612 = vmul.f32 %v1548, %v1376
    %v1613 = vmul.f32 %v1549, %v1386
    %v1614 = vmul.f32 %v1550, %v1396
    %v1615 = vmul.f32 %v1551, %v1406
    %v1616 = vmul.f32 %v1552, %v1416
    %v1617 = vmul.f32 %v1553, %v1426
    %v1618 = vmul.f32 %v1554, %v1436
    %v1619 = vmul.f32 %v1555, %v1446
    %v1620 = vmul.f32 %v1556, %v1456
    %v1621 = vmul.f32 %v1557, %v1466
    %v1622 = vmul.f32 %v1558, %v1476
    %v1623 = vmul.f32 %v1559, %v1486
    %v1624 = vmul.f32 %v1560, %v1496
    %v1625 = vld [vmem:[#allocation2] sm:$0xff]
    %v1626 = vsel %vm88, %v1561, 0.0
    %v1627 = vsel %vm88, %v1562, 0.0
    %v1628 = vadd.f32 %v1626, %v1627
    %v1629 = vsel %vm88, %v1563, 0.0
    %v1630 = vadd.f32 %v1628, %v1629
    %v1631 = vsel %vm88, %v1564, 0.0
    %v1632 = vadd.f32 %v1630, %v1631
    %v1633 = vsel %vm88, %v1565, 0.0
    %v1634 = vadd.f32 %v1632, %v1633
    %v1635 = vsel %vm88, %v1566, 0.0
    %v1636 = vadd.f32 %v1634, %v1635
    %v1637 = vsel %vm88, %v1567, 0.0
    %v1638 = vadd.f32 %v1636, %v1637
    %v1639 = vsel %vm88, %v1568, 0.0
    %v1640 = vadd.f32 %v1638, %v1639
    %v1641 = vrot.slane %v1640, 4
    %v1642 = vadd.f32 %v1640, %v1641
    %v1643 = vrot.slane %v1642, 2
    %v1644 = vadd.f32 %v1642, %v1643
    %v1645 = vrot.slane %v1644, 1
    %v1646 = vadd.f32 %v1644, %v1645
    %v1647 = vsel %vm88, %v1569, 0.0
    %v1648 = vsel %vm88, %v1570, 0.0
    %v1649 = vadd.f32 %v1647, %v1648
    %v1650 = vsel %vm88, %v1571, 0.0
    %v1651 = vadd.f32 %v1649, %v1650
    %v1652 = vsel %vm88, %v1572, 0.0
    %v1653 = vadd.f32 %v1651, %v1652
    %v1654 = vsel %vm88, %v1573, 0.0
    %v1655 = vadd.f32 %v1653, %v1654
    %v1656 = vsel %vm88, %v1574, 0.0
    %v1657 = vadd.f32 %v1655, %v1656
    %v1658 = vsel %vm88, %v1575, 0.0
    %v1659 = vadd.f32 %v1657, %v1658
    %v1660 = vsel %vm88, %v1576, 0.0
    %v1661 = vadd.f32 %v1659, %v1660
    %v1662 = vrot.slane %v1661, 4
    %v1663 = vadd.f32 %v1661, %v1662
    %v1664 = vrot.slane %v1663, 2
    %v1665 = vadd.f32 %v1663, %v1664
    %v1666 = vrot.slane %v1665, 1
    %v1667 = vadd.f32 %v1665, %v1666
    %v1668 = vsel %vm88, %v1577, 0.0
    %v1669 = vsel %vm88, %v1578, 0.0
    %v1670 = vadd.f32 %v1668, %v1669
    %v1671 = vsel %vm88, %v1579, 0.0
    %v1672 = vadd.f32 %v1670, %v1671
    %v1673 = vsel %vm88, %v1580, 0.0
    %v1674 = vadd.f32 %v1672, %v1673
    %v1675 = vsel %vm88, %v1581, 0.0
    %v1676 = vadd.f32 %v1674, %v1675
    %v1677 = vsel %vm88, %v1582, 0.0
    %v1678 = vadd.f32 %v1676, %v1677
    %v1679 = vsel %vm88, %v1583, 0.0
    %v1680 = vadd.f32 %v1678, %v1679
    %v1681 = vsel %vm88, %v1584, 0.0
    %v1682 = vadd.f32 %v1680, %v1681
    %v1683 = vrot.slane %v1682, 4
    %v1684 = vadd.f32 %v1682, %v1683
    %v1685 = vrot.slane %v1684, 2
    %v1686 = vadd.f32 %v1684, %v1685
    %v1687 = vrot.slane %v1686, 1
    %v1688 = vadd.f32 %v1686, %v1687
    %v1689 = vsel %vm88, %v1585, 0.0
    %v1690 = vsel %vm88, %v1586, 0.0
    %v1691 = vadd.f32 %v1689, %v1690
    %v1692 = vsel %vm88, %v1587, 0.0
    %v1693 = vadd.f32 %v1691, %v1692
    %v1694 = vsel %vm88, %v1588, 0.0
    %v1695 = vadd.f32 %v1693, %v1694
    %v1696 = vsel %vm88, %v1589, 0.0
    %v1697 = vadd.f32 %v1695, %v1696
    %v1698 = vsel %vm88, %v1590, 0.0
    %v1699 = vadd.f32 %v1697, %v1698
    %v1700 = vsel %vm88, %v1591, 0.0
    %v1701 = vadd.f32 %v1699, %v1700
    %v1702 = vsel %vm88, %v1592, 0.0
    %v1703 = vadd.f32 %v1701, %v1702
    %v1704 = vrot.slane %v1703, 4
    %v1705 = vadd.f32 %v1703, %v1704
    %v1706 = vrot.slane %v1705, 2
    %v1707 = vadd.f32 %v1705, %v1706
    %v1708 = vrot.slane %v1707, 1
    %v1709 = vadd.f32 %v1707, %v1708
    %v1710 = vsel %vm88, %v1593, 0.0
    %v1711 = vsel %vm88, %v1594, 0.0
    %v1712 = vadd.f32 %v1710, %v1711
    %v1713 = vsel %vm88, %v1595, 0.0
    %v1714 = vadd.f32 %v1712, %v1713
    %v1715 = vsel %vm88, %v1596, 0.0
    %v1716 = vadd.f32 %v1714, %v1715
    %v1717 = vsel %vm88, %v1597, 0.0
    %v1718 = vadd.f32 %v1716, %v1717
    %v1719 = vsel %vm88, %v1598, 0.0
    %v1720 = vadd.f32 %v1718, %v1719
    %v1721 = vsel %vm88, %v1599, 0.0
    %v1722 = vadd.f32 %v1720, %v1721
    %v1723 = vsel %vm88, %v1600, 0.0
    %v1724 = vadd.f32 %v1722, %v1723
    %v1725 = vrot.slane %v1724, 4
    %v1726 = vadd.f32 %v1724, %v1725
    %v1727 = vrot.slane %v1726, 2
    %v1728 = vadd.f32 %v1726, %v1727
    %v1729 = vrot.slane %v1728, 1
    %v1730 = vadd.f32 %v1728, %v1729
    %v1731 = vsel %vm88, %v1601, 0.0
    %v1732 = vsel %vm88, %v1602, 0.0
    %v1733 = vadd.f32 %v1731, %v1732
    %v1734 = vsel %vm88, %v1603, 0.0
    %v1735 = vadd.f32 %v1733, %v1734
    %v1736 = vsel %vm88, %v1604, 0.0
    %v1737 = vadd.f32 %v1735, %v1736
    %v1738 = vsel %vm88, %v1605, 0.0
    %v1739 = vadd.f32 %v1737, %v1738
    %v1740 = vsel %vm88, %v1606, 0.0
    %v1741 = vadd.f32 %v1739, %v1740
    %v1742 = vsel %vm88, %v1607, 0.0
    %v1743 = vadd.f32 %v1741, %v1742
    %v1744 = vsel %vm88, %v1608, 0.0
    %v1745 = vadd.f32 %v1743, %v1744
    %v1746 = vrot.slane %v1745, 4
    %v1747 = vadd.f32 %v1745, %v1746
    %v1748 = vrot.slane %v1747, 2
    %v1749 = vadd.f32 %v1747, %v1748
    %v1750 = vrot.slane %v1749, 1
    %v1751 = vadd.f32 %v1749, %v1750
    %v1752 = vsel %vm88, %v1609, 0.0
    %v1753 = vsel %vm88, %v1610, 0.0
    %v1754 = vadd.f32 %v1752, %v1753
    %v1755 = vsel %vm88, %v1611, 0.0
    %v1756 = vadd.f32 %v1754, %v1755
    %v1757 = vsel %vm88, %v1612, 0.0
    %v1758 = vadd.f32 %v1756, %v1757
    %v1759 = vsel %vm88, %v1613, 0.0
    %v1760 = vadd.f32 %v1758, %v1759
    %v1761 = vsel %vm88, %v1614, 0.0
    %v1762 = vadd.f32 %v1760, %v1761
    %v1763 = vsel %vm88, %v1615, 0.0
    %v1764 = vadd.f32 %v1762, %v1763
    %v1765 = vsel %vm88, %v1616, 0.0
    %v1766 = vadd.f32 %v1764, %v1765
    %v1767 = vrot.slane %v1766, 4
    %v1768 = vadd.f32 %v1766, %v1767
    %v1769 = vrot.slane %v1768, 2
    %v1770 = vadd.f32 %v1768, %v1769
    %v1771 = vrot.slane %v1770, 1
    %v1772 = vadd.f32 %v1770, %v1771
    %v1773 = vsel %vm88, %v1617, 0.0
    %v1774 = vsel %vm88, %v1618, 0.0
    %v1775 = vadd.f32 %v1773, %v1774
    %v1776 = vsel %vm88, %v1619, 0.0
    %v1777 = vadd.f32 %v1775, %v1776
    %v1778 = vsel %vm88, %v1620, 0.0
    %v1779 = vadd.f32 %v1777, %v1778
    %v1780 = vsel %vm88, %v1621, 0.0
    %v1781 = vadd.f32 %v1779, %v1780
    %v1782 = vsel %vm88, %v1622, 0.0
    %v1783 = vadd.f32 %v1781, %v1782
    %v1784 = vsel %vm88, %v1623, 0.0
    %v1785 = vadd.f32 %v1783, %v1784
    %v1786 = vsel %vm88, %v1624, 0.0
    %v1787 = vadd.f32 %v1785, %v1786
    %v1788 = vrot.slane %v1787, 4
    %v1789 = vadd.f32 %v1787, %v1788
    %v1790 = vrot.slane %v1789, 2
    %v1791 = vadd.f32 %v1789, %v1790
    %v1792 = vrot.slane %v1791, 1
    %v1793 = vadd.f32 %v1791, %v1792
    %vm1802 = vcmask 1041409
    %v1803 = vsel %vm1802, %v1667, %v1646
    %vm1804 = vcmask 1042434
    %v1805 = vsel %vm1804, %v1688, %v1803
    %vm1806 = vcmask 1043459
    %v1807 = vsel %vm1806, %v1709, %v1805
    %vm1808 = vcmask 1044484
    %v1809 = vsel %vm1808, %v1730, %v1807
    %vm1810 = vcmask 1045509
    %v1811 = vsel %vm1810, %v1751, %v1809
    %vm1812 = vcmask 1046534
    %v1813 = vsel %vm1812, %v1772, %v1811
    %vm1814 = vcmask 1047559
    %v1815 = vsel %vm1814, %v1793, %v1813
    %v1817 = vadd.f32 %v1625, %v1815
    %1818 = vst.msk [vmem:[#allocation2] sm:$0xff] %vm88, %v1817
    // Predicated region
    $region22: #{tpu_custom_call.1} parent=1 // pred_check
      %p1819 = pneg %p18
    $region23: #{tpu_custom_call.1} parent=1 // pred_check_branch
      %1821 = sbr.rel (%p1819) target = $region25
    $region24: #{tpu_custom_call.1} parent=1 // pred_region
      %v1822 = vld [vmem:[#allocation2] sm:$0xff]
      %v1823 = vld [vmem:[%s1] sm:$0x1]
      %v1824 = vmul.f32 %v1823, 0.015625
      %v1826 = vperm.slane %v1824, 0
      %v1828 = vmul.f32 %v1822, %v1826
      %v1829 = vld [vmem:[%s2] sm:$0xff]
      %v1830 = vld [vmem:[%s2 + $0x8] sm:$0xff]
      %v1831 = vld [vmem:[%s2 + $0x10] sm:$0xff]
      %v1832 = vld [vmem:[%s2 + $0x18] sm:$0xff]
      %v1833 = vld [vmem:[%s3] sm:$0x1]
      %v1835 = vperm.slane %v1833, 0
      %v1838 = vsel %vm88, %v1828, 0
      %1840 = vmatpush.msra.mxu0 0.0
      %1841 = vmatpush.msra.mxu0 0.0
      %1842 = vmatpush.msra.mxu0 0.0
      %1843 = vmatpush.msra.mxu0 0.0
      %1844 = vmatpush.msra.mxu0 0.0
      %1845 = vmatpush.msra.mxu0 0.0
      %1846 = vmatpush.msra.mxu0 0.0
      %1847 = vmatpush.msra.mxu0 0.0
      %1848 = vmatpush.msra.mxu0 0.0
      %1849 = vmatpush.msra.mxu0 0.0
      %1850 = vmatpush.msra.mxu0 0.0
      %1851 = vmatpush.msra.mxu0 0.0
      %1852 = vmatpush.msra.mxu0 %v1832
      %1853 = vmatpush.msra.mxu0 %v1831
      %1854 = vmatpush.msra.mxu0 %v1830
      %1855 = vmatpush.msra.mxu0 %v1829
      %1856 = vmatmul.f32.gmra.mxu0 %v1838
      %v1857 = vpop.f32.mrf.mxu0
      %v1858 = vadd.f32 %v1835, %v1857
      %1859 = vdwg.mxu0
      %1860 = vst [vmem:[#allocation3] sm:$0xff] %v1858
    $region25: #{tpu_custom_call.1} parent=1 // pred_fallthru
      _
    // Predicated region
    $region26: #{tpu_custom_call.1} parent=1 // pred_check
      _
    $region27: #{tpu_custom_call.1} parent=1 // pred_check_branch
      %1862 = sbr.rel (0) target = $region29
    $region28: #{tpu_custom_call.1} parent=1 // pred_region
      %1864 = vsyncadd [#allocation4], 0
      %s1866 = sshll.u32 [#allocation3], 4
      %s1867 = int_to_ptr.vmem [resolvable:$true] %s1866
      %s1868 = sshll.u32 %s4, 4
      %s1869 = int_to_ptr.hbm [resolvable:$true] %s1868
      %1871 = dma.vmem_to_hbm [thread:$0]  %s1867, 128, %s1869, [#allocation4]
    $region29: #{tpu_custom_call.1} parent=1 // pred_fallthru
      _
    // Predicated region
    $region30: #{tpu_custom_call.1} parent=1 // pred_check
      _
    $region31: #{tpu_custom_call.1} parent=1 // pred_check_branch
      %1873 = sbr.rel (0) target = $region33
    $region32: #{tpu_custom_call.1} parent=1 // pred_region
      %1875 = dma.done [#allocation4], 128
    $region33: #{tpu_custom_call.1} parent=1 // pred_fallthru
      _
    %1876 = vsyncpa [#allocation4], 1

</llo_original>
